<compile_context>
chip_gen: v5e
topology: v5e:2x2
jax: 0.10.0
libtpu: 0.0.40
codegen_flags: <defaults>
</compile_context>

<pallas_src>
import jax
import jax.numpy as jnp
import numpy as np
from jax.experimental import pallas as pl
from jax.experimental.pallas import tpu as pltpu

# ----------------------------- dimensions ----------------------------------
TOTAL_B = 512            # total rows evaluated in one call (timesteps x batch)
TILE_B = 256             # rows per grid step (amortizes MXU / pipeline latency)
OBS_DIM = 16
STATE_DIM = 16
ACTION_DIM = 8
HIDDEN_DIM = 32          # SimpleModel hidden
OBS_EMBED = 32           # config_repr.obs_embedding_dim
STATE_EMBED = 32         # config_repr.state_embedding_dim
ACT_HID = 16             # config_seq.action_embedder.hidden_size
INPUT_SIZE = OBS_EMBED + STATE_EMBED + ACT_HID   # 80
Q_H1, Q_H2 = 64, 64      # config_critic.hidden_dims
ZERO_BOTTOM = False

LANES = 128                                  # fused lane width (MXU native)
IN_TOT = OBS_DIM + STATE_DIM + ACTION_DIM    # 40 = concat(obs, state, action)
IN_PAD = 48                                  # padded to a 16-aligned row count

# static, 16-aligned row offsets inside the packed bf16 weight slab
O_W_IN = 0                       # (48, 128)  block-diag [wo_in | ws_in | wa] (+0 pad rows)
O_W_RES = O_W_IN + IN_PAD        # (128,128)  block-diag [wo_res | ws_res | 0]
O_W_OUT = O_W_RES + LANES        # (128,128)  block-diag [wo_out | ws_out | I]
O_W_Q1 = O_W_OUT + LANES         # (128,128)  [w11 | w21] on rows 0..79
O_W_Q2 = O_W_Q1 + LANES          # (128,128)  block-diag [w12 | w22]
O_W_Q3 = O_W_Q2 + LANES          # (128,128)  w13 -> lane 0, w23 -> lane 1
SLAB_ROWS = O_W_Q3 + LANES       # 688
BIAS_ROWS = 8                    # f32 bias slab: 6 fused bias rows + 2 zero rows


def _relu(x):
    return jnp.maximum(x, 0.0)


# ------------------------------ kernel --------------------------------------
def critic_kernel(x_ref, w_ref, b_ref, out_ref):
    f32, bf16 = jnp.float32, jnp.bfloat16

    # static, 16-aligned slices into the VMEM-resident bf16 weight slab
    w_in = w_ref[O_W_IN:O_W_IN + IN_PAD, :]      # (48,128)
    w_res = w_ref[O_W_RES:O_W_RES + LANES, :]    # (128,128)
    w_out = w_ref[O_W_OUT:O_W_OUT + LANES, :]    # (128,128)
    w_q1 = w_ref[O_W_Q1:O_W_Q1 + LANES, :]       # (128,128)
    w_q2 = w_ref[O_W_Q2:O_W_Q2 + LANES, :]       # (128,128)
    w_q3 = w_ref[O_W_Q3:O_W_Q3 + LANES, :]       # (128,128)

    # f32 fused bias rows (elementwise path stays f32 on all generations)
    b_in, b_res, b_out = b_ref[0:1, :], b_ref[1:2, :], b_ref[2:3, :]
    b_q1, b_q2, b_q3 = b_ref[3:4, :], b_ref[4:5, :], b_ref[5:6, :]

    # ---- fused embedders: lanes = [h_obs(32) | h_st(32) | e_act(16) | 0(48)]
    x = x_ref[...].astype(bf16)                                    # (TILE_B,48)
    h = _relu(jnp.dot(x, w_in, preferred_element_type=f32) + b_in)
    # residual block (action / pad lanes pass through: their blocks are zero)
    h = h + _relu(jnp.dot(h.astype(bf16), w_res, preferred_element_type=f32) + b_res)
    # output projection -> e = [e_obs(32) | e_st(32) | e_act(16) | 0(48)]
    e = jnp.dot(h.astype(bf16), w_out, preferred_element_type=f32) + b_out

    # ---- fused twin Q heads ------------------------------------------------
    q = _relu(jnp.dot(e.astype(bf16), w_q1, preferred_element_type=f32) + b_q1)
    q = _relu(jnp.dot(q.astype(bf16), w_q2, preferred_element_type=f32) + b_q2)
    # q1 in lane 0, q2 in lane 1, remaining lanes zero -> one lane-dense store
    out_ref[...] = jnp.dot(q.astype(bf16), w_q3, preferred_element_type=f32) + b_q3


# ------------------------------ params --------------------------------------
PARAM_ORDER = [
    "wo_in", "bo_in", "wo_res", "bo_res", "wo_out", "bo_out",
    "ws_in", "bs_in", "ws_res", "bs_res", "ws_out", "bs_out",
    "wa", "ba",
    "w11", "b11", "w12", "b12", "w13", "b13",
    "w21", "b21", "w22", "b22", "w23", "b23",
]


def init_params(key):
    shapes = {
        # observ embedder
        "wo_in": (OBS_DIM, HIDDEN_DIM), "bo_in": (1, HIDDEN_DIM),
        "wo_res": (HIDDEN_DIM, HIDDEN_DIM), "bo_res": (1, HIDDEN_DIM),
        "wo_out": (HIDDEN_DIM, OBS_EMBED), "bo_out": (1, OBS_EMBED),
        # state embedder
        "ws_in": (STATE_DIM, HIDDEN_DIM), "bs_in": (1, HIDDEN_DIM),
        "ws_res": (HIDDEN_DIM, HIDDEN_DIM), "bs_res": (1, HIDDEN_DIM),
        "ws_out": (HIDDEN_DIM, STATE_EMBED), "bs_out": (1, STATE_EMBED),
        # action embedder
        "wa": (ACTION_DIM, ACT_HID), "ba": (1, ACT_HID),
        # qf1
        "w11": (INPUT_SIZE, Q_H1), "b11": (1, Q_H1),
        "w12": (Q_H1, Q_H2), "b12": (1, Q_H2),
        "w13": (Q_H2, 1), "b13": (1, 1),
        # qf2
        "w21": (INPUT_SIZE, Q_H1), "b21": (1, Q_H1),
        "w22": (Q_H1, Q_H2), "b22": (1, Q_H2),
        "w23": (Q_H2, 1), "b23": (1, 1),
    }
    keys = jax.random.split(key, len(PARAM_ORDER))
    params = {}
    for k, name in zip(keys, PARAM_ORDER):
        shp = shapes[name]
        fan_in = shp[0] if shp[0] > 1 else shp[1]
        params[name] = (jax.random.normal(k, shp, dtype=jnp.float32)
                        * (1.0 / jnp.sqrt(jnp.float32(fan_in))))
    return params


def pack_params(p, zero_bottom=ZERO_BOTTOM):
    """One-time param prep.

    Returns:
      weight_slab: (688, 128) bfloat16 block-structured slab (172 KiB).
      bias_slab:   (8, 128)  float32 fused bias rows.
    Zero / identity blocks implement concatenation, residual passthrough and
    (optionally) the zero_bottom masking exactly.
    """
    wslab = np.zeros((SLAB_ROWS, LANES), dtype=np.float32)
    bslab = np.zeros((BIAS_ROWS, LANES), dtype=np.float32)

    def put(slab, r0, c0, arr):
        a = np.asarray(arr, dtype=np.float32)
        slab[r0:r0 + a.shape[0], c0:c0 + a.shape[1]] = a

    # fused input layer: block-diag over (obs, st, act); rows 40..47 stay zero (pad)
    put(wslab, O_W_IN, 0, p["wo_in"])
    put(wslab, O_W_IN + OBS_DIM, HIDDEN_DIM, p["ws_in"])
    put(wslab, O_W_IN + OBS_DIM + STATE_DIM, 2 * HIDDEN_DIM, p["wa"])
    # residual block: block-diag over (h_obs, h_st); act/pad chunks zero => passthrough
    put(wslab, O_W_RES, 0, p["wo_res"])
    put(wslab, O_W_RES + HIDDEN_DIM, HIDDEN_DIM, p["ws_res"])
    # output projection: block-diag wo_out / ws_out, identity block for e_act
    if not zero_bottom:
        put(wslab, O_W_OUT, 0, p["wo_out"])
    put(wslab, O_W_OUT + HIDDEN_DIM, OBS_EMBED, p["ws_out"])
    put(wslab, O_W_OUT + 2 * HIDDEN_DIM, OBS_EMBED + STATE_EMBED,
        np.eye(ACT_HID, dtype=np.float32))
    # fused Q layer 1: [w11 | w21]
    put(wslab, O_W_Q1, 0, p["w11"])
    put(wslab, O_W_Q1, Q_H1, p["w21"])
    # fused Q layer 2: block-diag [w12 | w22]
    put(wslab, O_W_Q2, 0, p["w12"])
    put(wslab, O_W_Q2 + Q_H1, Q_H1, p["w22"])
    # fused Q layer 3: q1 -> lane 0, q2 -> lane 1
    put(wslab, O_W_Q3, 0, p["w13"])
    put(wslab, O_W_Q3 + Q_H2, 1, p["w23"])
    # fused biases (kept f32)
    put(bslab, 0, 0, p["bo_in"])
    put(bslab, 0, HIDDEN_DIM, p["bs_in"])
    put(bslab, 0, 2 * HIDDEN_DIM, p["ba"])
    put(bslab, 1, 0, p["bo_res"])
    put(bslab, 1, HIDDEN_DIM, p["bs_res"])
    if not zero_bottom:
        put(bslab, 2, 0, p["bo_out"])
    put(bslab, 2, OBS_EMBED, p["bs_out"])
    put(bslab, 3, 0, p["b11"])
    put(bslab, 3, Q_H1, p["b21"])
    put(bslab, 4, 0, p["b12"])
    put(bslab, 4, Q_H1, p["b22"])
    put(bslab, 5, 0, p["b13"])
    put(bslab, 5, 1, p["b23"])
    return jnp.asarray(wslab, dtype=jnp.bfloat16), jnp.asarray(bslab)


# ------------------------------ wrapper --------------------------------------
@jax.jit
def critic_forward(observs, states, current_actions, weight_slab, bias_slab):
    n = observs.shape[0]
    # fuse the 3 entry DMAs into one lane-padded input slab (B, 48)
    x = jnp.concatenate([observs, states, current_actions], axis=-1)
    x = jnp.pad(x, ((0, 0), (0, IN_PAD - IN_TOT)))
    n_pad = ((n + TILE_B - 1) // TILE_B) * TILE_B
    if n_pad != n:
        x = jnp.pad(x, ((0, n_pad - n), (0, 0)))   # padded rows sliced off below
    grid = (n_pad // TILE_B,)

    cost = pl.CostEstimate(
        flops=2 * n_pad * (IN_PAD * LANES + 5 * LANES * LANES),
        transcendentals=0,
        bytes_accessed=(n_pad * IN_PAD * 4 + SLAB_ROWS * LANES * 2
                        + BIAS_ROWS * LANES * 4 + n_pad * LANES * 4),
    )

    out = pl.pallas_call(
        critic_kernel,
        out_shape=jax.ShapeDtypeStruct((n_pad, LANES), jnp.float32),
        grid=grid,
        in_specs=[
            # batch-tiled input
            pl.BlockSpec((TILE_B, IN_PAD), lambda i: (i, 0)),
            # weights / biases: constant block index -> DMA'd once, VMEM-resident
            pl.BlockSpec((SLAB_ROWS, LANES), lambda i: (0, 0)),
            pl.BlockSpec((BIAS_ROWS, LANES), lambda i: (0, 0)),
        ],
        out_specs=pl.BlockSpec((TILE_B, LANES), lambda i: (i, 0)),
        compiler_params=pltpu.CompilerParams(
            dimension_semantics=("parallel",)),   # 2x on v7x (2 TCs)
        cost_estimate=cost,
    )(x, weight_slab, bias_slab)
    return out[:n, 0:1], out[:n, 1:2]


# --------------------------- pure-JAX reference ------------------------------
def reference_forward(observs, states, current_actions, params):
    p = params

    def simple_model(x, w_in, b_in, w_res, b_res, w_out, b_out):
        h = jnp.maximum(x @ w_in + b_in, 0.0)
        h = h + jnp.maximum(h @ w_res + b_res, 0.0)
        return h @ w_out + b_out

    e_obs = simple_model(observs, p["wo_in"], p["bo_in"], p["wo_res"],
                         p["bo_res"], p["wo_out"], p["bo_out"])
    if ZERO_BOTTOM:
        e_obs = jnp.zeros_like(e_obs)
    e_st = simple_model(states, p["ws_in"], p["bs_in"], p["ws_res"],
                        p["bs_res"], p["ws_out"], p["bs_out"])
    e_act = jnp.maximum(current_actions @ p["wa"] + p["ba"], 0.0)
    x = jnp.concatenate([e_obs, e_st, e_act], axis=-1)

    def qf(x, w1, b1, w2, b2, w3, b3):
        h = jnp.maximum(x @ w1 + b1, 0.0)
        h = jnp.maximum(h @ w2 + b2, 0.0)
        return h @ w3 + b3

    q1 = qf(x, p["w11"], p["b11"], p["w12"], p["b12"], p["w13"], p["b13"])
    q2 = qf(x, p["w21"], p["b21"], p["w22"], p["b22"], p["w23"], p["b23"])
    return q1, q2


# ------------------------------- main ----------------------------------------
if __name__ == "__main__":
    key = jax.random.PRNGKey(0)
    k_obs, k_st, k_act, k_params = jax.random.split(key, 4)

    observs = jax.random.normal(k_obs, (TOTAL_B, OBS_DIM), dtype=jnp.float32)
    states = jax.random.normal(k_st, (TOTAL_B, STATE_DIM), dtype=jnp.float32)
    current_actions = jnp.tanh(
        jax.random.normal(k_act, (TOTAL_B, ACTION_DIM), dtype=jnp.float32))

    params = init_params(k_params)
    # deployment precision: weights are bf16-representable (exact when packed)
    params = jax.tree_util.tree_map(
        lambda a: a.astype(jnp.bfloat16).astype(jnp.float32), params)
    weight_slab, bias_slab = pack_params(params, zero_bottom=ZERO_BOTTOM)

    q1, q2 = critic_forward(observs, states, current_actions,
                            weight_slab, bias_slab)
    q1, q2 = jax.block_until_ready((q1, q2))

    q1_ref, q2_ref = reference_forward(observs, states, current_actions, params)
    assert q1.shape == (TOTAL_B, 1) and q2.shape == (TOTAL_B, 1)
    # bf16 activations in the MXU dots -> loosened tolerance (f32 accumulation kept)
    assert jnp.allclose(q1, q1_ref, atol=2e-2, rtol=2e-2)
    assert jnp.allclose(q2, q2_ref, atol=2e-2, rtol=2e-2)

    print("KERNEL_OK")
</pallas_src>

<mosaic_0001>
module attributes {stable_mosaic.version = 11 : i64} {
  func.func @critic_kernel(%arg0: i32, %arg1: memref<256x48xf32, #tpu.memory_space<vmem>>, %arg2: memref<688x128xbf16, #tpu.memory_space<vmem>>, %arg3: memref<8x128xf32, #tpu.memory_space<vmem>>, %arg4: memref<256x128xf32, #tpu.memory_space<vmem>>) attributes {dimension_semantics = [#tpu.dimension_semantics<parallel>], iteration_bounds = array<i64: 2>, scalar_prefetch = 0 : i64, scratch_operands = 0 : i64, tpu.core_type = #tpu.core_type<tc>, window_params = [{transform_indices = @transform_0, window_bounds = array<i64: 256, 48>}, {pipeline_mode = #tpu.pipeline_mode<synchronous>, transform_indices = @transform_1, window_bounds = array<i64: 688, 128>}, {pipeline_mode = #tpu.pipeline_mode<synchronous>, transform_indices = @transform_2, window_bounds = array<i64: 8, 128>}, {transform_indices = @transform_3, window_bounds = array<i64: 256, 128>}]} {
    %c0 = arith.constant 0 : index
    %c0_0 = arith.constant 0 : index
    %0 = vector.load %arg2[%c0, %c0_0] : memref<688x128xbf16, #tpu.memory_space<vmem>>, vector<48x128xbf16>
    %c48 = arith.constant 48 : index
    %c0_1 = arith.constant 0 : index
    %1 = vector.load %arg2[%c48, %c0_1] : memref<688x128xbf16, #tpu.memory_space<vmem>>, vector<128x128xbf16>
    %c176 = arith.constant 176 : index
    %c0_2 = arith.constant 0 : index
    %2 = vector.load %arg2[%c176, %c0_2] : memref<688x128xbf16, #tpu.memory_space<vmem>>, vector<128x128xbf16>
    %c304 = arith.constant 304 : index
    %c0_3 = arith.constant 0 : index
    %3 = vector.load %arg2[%c304, %c0_3] : memref<688x128xbf16, #tpu.memory_space<vmem>>, vector<128x128xbf16>
    %c432 = arith.constant 432 : index
    %c0_4 = arith.constant 0 : index
    %4 = vector.load %arg2[%c432, %c0_4] : memref<688x128xbf16, #tpu.memory_space<vmem>>, vector<128x128xbf16>
    %c560 = arith.constant 560 : index
    %c0_5 = arith.constant 0 : index
    %5 = vector.load %arg2[%c560, %c0_5] : memref<688x128xbf16, #tpu.memory_space<vmem>>, vector<128x128xbf16>
    %c0_6 = arith.constant 0 : index
    %c0_7 = arith.constant 0 : index
    %6 = vector.load %arg3[%c0_6, %c0_7] : memref<8x128xf32, #tpu.memory_space<vmem>>, vector<1x128xf32>
    %c1 = arith.constant 1 : index
    %c0_8 = arith.constant 0 : index
    %7 = vector.load %arg3[%c1, %c0_8] : memref<8x128xf32, #tpu.memory_space<vmem>>, vector<1x128xf32>
    %c2 = arith.constant 2 : index
    %c0_9 = arith.constant 0 : index
    %8 = vector.load %arg3[%c2, %c0_9] : memref<8x128xf32, #tpu.memory_space<vmem>>, vector<1x128xf32>
    %c3 = arith.constant 3 : index
    %c0_10 = arith.constant 0 : index
    %9 = vector.load %arg3[%c3, %c0_10] : memref<8x128xf32, #tpu.memory_space<vmem>>, vector<1x128xf32>
    %c4 = arith.constant 4 : index
    %c0_11 = arith.constant 0 : index
    %10 = vector.load %arg3[%c4, %c0_11] : memref<8x128xf32, #tpu.memory_space<vmem>>, vector<1x128xf32>
    %c5 = arith.constant 5 : index
    %c0_12 = arith.constant 0 : index
    %11 = vector.load %arg3[%c5, %c0_12] : memref<8x128xf32, #tpu.memory_space<vmem>>, vector<1x128xf32>
    %c0_13 = arith.constant 0 : index
    %c0_14 = arith.constant 0 : index
    %12 = vector.load %arg1[%c0_13, %c0_14] : memref<256x48xf32, #tpu.memory_space<vmem>>, vector<256x48xf32>
    %13 = arith.truncf %12 : vector<256x48xf32> to vector<256x48xbf16>
    %cst = arith.constant dense<0.000000e+00> : vector<256x128xf32>
    %14 = tpu.matmul %13, %0, %cst {dimension_numbers = #tpu.dot_dimension_numbers<[1], [0], [0], [1], [0, 0, 1, 1], [], []>} : vector<256x48xbf16>, vector<48x128xbf16>, vector<256x128xf32> -> vector<256x128xf32>
    %15 = vector.broadcast %6 : vector<1x128xf32> to vector<256x128xf32>
    %16 = arith.addf %14, %15 : vector<256x128xf32>
    %cst_15 = arith.constant 0.000000e+00 : f32
    %17 = vector.broadcast %cst_15 : f32 to vector<256x128xf32>
    %18 = arith.maximumf %16, %17 : vector<256x128xf32>
    %19 = arith.truncf %18 : vector<256x128xf32> to vector<256x128xbf16>
    %cst_16 = arith.constant dense<0.000000e+00> : vector<256x128xf32>
    %20 = tpu.matmul %19, %1, %cst_16 {dimension_numbers = #tpu.dot_dimension_numbers<[1], [0], [0], [1], [0, 0, 1, 1], [], []>} : vector<256x128xbf16>, vector<128x128xbf16>, vector<256x128xf32> -> vector<256x128xf32>
    %21 = vector.broadcast %7 : vector<1x128xf32> to vector<256x128xf32>
    %22 = arith.addf %20, %21 : vector<256x128xf32>
    %cst_17 = arith.constant 0.000000e+00 : f32
    %23 = vector.broadcast %cst_17 : f32 to vector<256x128xf32>
    %24 = arith.maximumf %22, %23 : vector<256x128xf32>
    %25 = arith.addf %18, %24 : vector<256x128xf32>
    %26 = arith.truncf %25 : vector<256x128xf32> to vector<256x128xbf16>
    %cst_18 = arith.constant dense<0.000000e+00> : vector<256x128xf32>
    %27 = tpu.matmul %26, %2, %cst_18 {dimension_numbers = #tpu.dot_dimension_numbers<[1], [0], [0], [1], [0, 0, 1, 1], [], []>} : vector<256x128xbf16>, vector<128x128xbf16>, vector<256x128xf32> -> vector<256x128xf32>
    %28 = vector.broadcast %8 : vector<1x128xf32> to vector<256x128xf32>
    %29 = arith.addf %27, %28 : vector<256x128xf32>
    %30 = arith.truncf %29 : vector<256x128xf32> to vector<256x128xbf16>
    %cst_19 = arith.constant dense<0.000000e+00> : vector<256x128xf32>
    %31 = tpu.matmul %30, %3, %cst_19 {dimension_numbers = #tpu.dot_dimension_numbers<[1], [0], [0], [1], [0, 0, 1, 1], [], []>} : vector<256x128xbf16>, vector<128x128xbf16>, vector<256x128xf32> -> vector<256x128xf32>
    %32 = vector.broadcast %9 : vector<1x128xf32> to vector<256x128xf32>
    %33 = arith.addf %31, %32 : vector<256x128xf32>
    %cst_20 = arith.constant 0.000000e+00 : f32
    %34 = vector.broadcast %cst_20 : f32 to vector<256x128xf32>
    %35 = arith.maximumf %33, %34 : vector<256x128xf32>
    %36 = arith.truncf %35 : vector<256x128xf32> to vector<256x128xbf16>
    %cst_21 = arith.constant dense<0.000000e+00> : vector<256x128xf32>
    %37 = tpu.matmul %36, %4, %cst_21 {dimension_numbers = #tpu.dot_dimension_numbers<[1], [0], [0], [1], [0, 0, 1, 1], [], []>} : vector<256x128xbf16>, vector<128x128xbf16>, vector<256x128xf32> -> vector<256x128xf32>
    %38 = vector.broadcast %10 : vector<1x128xf32> to vector<256x128xf32>
    %39 = arith.addf %37, %38 : vector<256x128xf32>
    %cst_22 = arith.constant 0.000000e+00 : f32
    %40 = vector.broadcast %cst_22 : f32 to vector<256x128xf32>
    %41 = arith.maximumf %39, %40 : vector<256x128xf32>
    %42 = arith.truncf %41 : vector<256x128xf32> to vector<256x128xbf16>
    %cst_23 = arith.constant dense<0.000000e+00> : vector<256x128xf32>
    %43 = tpu.matmul %42, %5, %cst_23 {dimension_numbers = #tpu.dot_dimension_numbers<[1], [0], [0], [1], [0, 0, 1, 1], [], []>} : vector<256x128xbf16>, vector<128x128xbf16>, vector<256x128xf32> -> vector<256x128xf32>
    %44 = vector.broadcast %11 : vector<1x128xf32> to vector<256x128xf32>
    %45 = arith.addf %43, %44 : vector<256x128xf32>
    %c0_24 = arith.constant 0 : index
    %c0_25 = arith.constant 0 : index
    %46 = vector.load %arg4[%c0_24, %c0_25] : memref<256x128xf32, #tpu.memory_space<vmem>>, vector<256x128xf32>
    tpu.vector_store %arg4[%c0_24, %c0_25], %45 {strides = array<i32>} : memref<256x128xf32, #tpu.memory_space<vmem>>, vector<256x128xf32>,
    return
  }
  func.func @transform_0(%arg0: i32) -> (i32, i32) {
    %c0_i32 = arith.constant 0 : i32
    %c0_i32_0 = arith.constant 0 : i32
    return %arg0, %c0_i32 : i32, i32
  }
  func.func @transform_1(%arg0: i32) -> (i32, i32) {
    %c0_i32 = arith.constant 0 : i32
    %c0_i32_0 = arith.constant 0 : i32
    %c0_i32_1 = arith.constant 0 : i32
    return %c0_i32, %c0_i32_0 : i32, i32
  }
  func.func @transform_2(%arg0: i32) -> (i32, i32) {
    %c0_i32 = arith.constant 0 : i32
    %c0_i32_0 = arith.constant 0 : i32
    %c0_i32_1 = arith.constant 0 : i32
    return %c0_i32, %c0_i32_0 : i32, i32
  }
  func.func @transform_3(%arg0: i32) -> (i32, i32) {
    %c0_i32 = arith.constant 0 : i32
    %c0_i32_0 = arith.constant 0 : i32
    return %arg0, %c0_i32 : i32, i32
  }
}

</mosaic_0001>

<llo_original>
// kernel: critic_forward.1
$region0: #{critic_forward.1}
  #allocation0 [shape = 'u32[]', space=smem, size = 0x4, offset = 0x4, fixed_abs, tag = 'smem constant byte address 0x4 - core index']
  #allocation1 [shape = 'u32[72,128]{1,0:T(1,128)}', space=vmem, size = 0x9000, scoped, tag = 'internal scratch']
  %s0 = inlined_call_operand.vmem [shape: f32[512,48], index: 0, kind: input, shape index: {}]
  %s1 = inlined_call_operand.vmem [shape: bf16[688,128], index: 1, kind: input, shape index: {}]
  %s2 = inlined_call_operand.vmem [shape: f32[8,128], index: 2, kind: input, shape index: {}]
  %s3 = inlined_call_operand.vmem [shape: f32[512,128], index: 3, kind: output, shape index: {}]
  %s4 = sld [smem:[#allocation0]]
  $region45: #{critic_forward.1} parent=0
    _
  %s6 = ssub.s32 1, %s4
  %s7 = scalar_select 0, %s6, %s4
  loop: start=0, step=1, limit=4
  $region2: #{critic_forward.1} parent=0 // loop_pre_header
    _
  $region3: #{critic_forward.1} parent=0 // loop_header
    %s9 = sphi 0, %s13
    %p10 = scmp.ge.s32.totalorder %s9, 4
    %s19 = sphi 0, %s21
    %s22 = sphi 0, %s19
    %s23 = sphi 0, %s22
    %s39 = sphi 0, %s23
    %s43 = sphi 0, %s43
    %s45 = sphi 0, %s43
    %s46 = sphi 0, %s45
    %s60 = sphi 0, %s46
    %s64 = sphi 0, %s64
    %s66 = sphi 0, %s64
    %s67 = sphi 0, %s66
    %s81 = sphi 0, %s67
    %s87 = sphi 0, %s89
    %s90 = sphi 0, %s87
    %s91 = sphi 0, %s90
    %s107 = sphi 0, %s91
  $region4: #{critic_forward.1} parent=0 // loop_header_branch
    %12 = sbr.rel (%p10) target = $region8
  $region5: #{critic_forward.1} parent=0 // loop_body
    %s14 = ssub.s32 %s9, 1
    %s15 = ssub.s32 %s9, 2
    %s16 = sadd.s32 %s9, 1
    %s17 = ssub.s32 %s9, %s16
    %p18 = scmp.eq.s32.totalorder %s17, 0
    %s20 = sadd.s32 %s19, 1
    %s21 = scalar_select %p18, %s19, %s20
    %p24 = pneg %p18
    %p25 = scmp.eq.s32.totalorder %s9, 1
    %p26 = por %p24, %p25
    %p27 = scmp.ne.s32.totalorder %s19, %s22
    %p28 = scmp.eq.s32.totalorder %s9, 0
    %p29 = por %p27, %p28
    %p30 = scmp.ne.s32.totalorder %s19, %s22
    %p31 = scmp.eq.s32.totalorder %s14, 1
    %p32 = por %p30, %p31
    %p33 = scmp.ne.s32.totalorder %s22, %s23
    %p34 = scmp.eq.s32.totalorder %s14, 0
    %p35 = por %p33, %p34
    %p36 = scmp.ne.s32.totalorder %s22, %s23
    %p37 = scmp.eq.s32.totalorder %s15, 1
    %p38 = por %p36, %p37
    %p40 = scmp.ne.s32.totalorder %s23, %s39
    %p41 = scmp.eq.s32.totalorder %s15, 0
    %p42 = por %p40, %p41
    %s44 = sadd.s32 %s43, 1
    %p47 = scmp.eq.s32.totalorder %s9, 1
    %p48 = scmp.ne.s32.totalorder %s43, %s45
    %p49 = scmp.eq.s32.totalorder %s9, 0
    %p50 = por %p48, %p49
    %p51 = scmp.ne.s32.totalorder %s43, %s45
    %p52 = scmp.eq.s32.totalorder %s14, 1
    %p53 = por %p51, %p52
    %p54 = scmp.ne.s32.totalorder %s45, %s46
    %p55 = scmp.eq.s32.totalorder %s14, 0
    %p56 = por %p54, %p55
    %p57 = scmp.ne.s32.totalorder %s45, %s46
    %p58 = scmp.eq.s32.totalorder %s15, 1
    %p59 = por %p57, %p58
    %p61 = scmp.ne.s32.totalorder %s46, %s60
    %p62 = scmp.eq.s32.totalorder %s15, 0
    %p63 = por %p61, %p62
    %s65 = sadd.s32 %s64, 1
    %p68 = scmp.eq.s32.totalorder %s9, 1
    %p69 = scmp.ne.s32.totalorder %s64, %s66
    %p70 = scmp.eq.s32.totalorder %s9, 0
    %p71 = por %p69, %p70
    %p72 = scmp.ne.s32.totalorder %s64, %s66
    %p73 = scmp.eq.s32.totalorder %s14, 1
    %p74 = por %p72, %p73
    %p75 = scmp.ne.s32.totalorder %s66, %s67
    %p76 = scmp.eq.s32.totalorder %s14, 0
    %p77 = por %p75, %p76
    %p78 = scmp.ne.s32.totalorder %s66, %s67
    %p79 = scmp.eq.s32.totalorder %s15, 1
    %p80 = por %p78, %p79
    %p82 = scmp.ne.s32.totalorder %s67, %s81
    %p83 = scmp.eq.s32.totalorder %s15, 0
    %p84 = por %p82, %p83
    %s85 = ssub.s32 %s9, %s16
    %p86 = scmp.eq.s32.totalorder %s85, 0
    %s88 = sadd.s32 %s87, 1
    %s89 = scalar_select %p86, %s87, %s88
    %p92 = pneg %p86
    %p93 = scmp.eq.s32.totalorder %s9, 1
    %p94 = por %p92, %p93
    %p95 = scmp.ne.s32.totalorder %s87, %s90
    %p96 = scmp.eq.s32.totalorder %s9, 0
    %p97 = por %p95, %p96
    %p98 = scmp.ne.s32.totalorder %s87, %s90
    %p99 = scmp.eq.s32.totalorder %s14, 1
    %p100 = por %p98, %p99
    %p101 = scmp.ne.s32.totalorder %s90, %s91
    %p102 = scmp.eq.s32.totalorder %s14, 0
    %p103 = por %p101, %p102
    %p104 = scmp.ne.s32.totalorder %s90, %s91
    %p105 = scmp.eq.s32.totalorder %s15, 1
    %p106 = por %p104, %p105
    %p108 = scmp.ne.s32.totalorder %s91, %s107
    %p109 = scmp.eq.s32.totalorder %s15, 0
    %p110 = por %p108, %p109
    %p111 = scmp.le.s32.totalorder 1, %s9
    %p112 = scmp.lt.s32.totalorder %s9, 3
    %p113 = pnand %p111, %p112
    %p114 = pneg %p113
    // Predicated region
    $region9: #{critic_forward.1} parent=5 // pred_check
      _
    $region10: #{critic_forward.1} parent=5 // pred_check_branch
      %116 = sbr.rel (%p113) target = $region12
    $region11: #{critic_forward.1} parent=5 // pred_region
      %s117 = ssub.s32 %s9, 1
      // Predicated region
      $region13: #{critic_forward.1} parent=11 // pred_check
        %p118 = pneg %p56
      $region14: #{critic_forward.1} parent=11 // pred_check_branch
        %120 = sbr.rel (%p118) target = $region16
      $region15: #{critic_forward.1} parent=11 // pred_region
        _
      $region16: #{critic_forward.1} parent=11 // pred_fallthru
        _
      // Predicated region
      $region17: #{critic_forward.1} parent=11 // pred_check
        %p121 = pneg %p77
      $region18: #{critic_forward.1} parent=11 // pred_check_branch
        %123 = sbr.rel (%p121) target = $region20
      $region19: #{critic_forward.1} parent=11 // pred_region
        _
      $region20: #{critic_forward.1} parent=11 // pred_fallthru
        _
    $region12: #{critic_forward.1} parent=5 // pred_fallthru
      _
    %p124 = scmp.lt.s32.totalorder %s9, 2
    // Predicated region
    $region21: #{critic_forward.1} parent=5 // pred_check
      %p125 = pneg %p124
    $region22: #{critic_forward.1} parent=5 // pred_check_branch
      %127 = sbr.rel (%p125) target = $region24
    $region23: #{critic_forward.1} parent=5 // pred_region
      // Predicated region
      $region25: #{critic_forward.1} parent=23 // pred_check
        %p128 = pneg %p29
      $region26: #{critic_forward.1} parent=23 // pred_check_branch
        %130 = sbr.rel (%p128) target = $region28
      $region27: #{critic_forward.1} parent=23 // pred_region
        %s131 = smul.u32 32, %s9
        %p132 = scmp.lt.s32.totalorder %s131, 63
        %s133 = scalar_select %p132, %s131, 63
        %s134 = smul.addr %s133, 8
        %s135 = scalar_lea.vmem %s0, %s134
        %s136 = smul.u32 32, %s9
      $region28: #{critic_forward.1} parent=23 // pred_fallthru
        _
    $region24: #{critic_forward.1} parent=5 // pred_fallthru
      _
    %p137 = scmp.le.s32.totalorder 1, %s9
    %p138 = scmp.lt.s32.totalorder %s9, 3
    %p139 = pnand %p137, %p138
    %p140 = pneg %p139
    // Predicated region
    $region29: #{critic_forward.1} parent=5 // pred_check
      _
    $region30: #{critic_forward.1} parent=5 // pred_check_branch
      %142 = sbr.rel (%p139) target = $region32
    $region31: #{critic_forward.1} parent=5 // pred_region
      %s143 = ssub.s32 %s9, 1
      %s144 = smul.u32 32, %s14
      %p145 = scmp.lt.s32.totalorder %s144, 63
      %s146 = scalar_select %p145, %s144, 63
      %s147 = smul.addr %s146, 8
      %s148 = scalar_lea.vmem %s0, %s147
      %p149 = pneg %p35
      %p150 = pneg %p32
      %p151 = pneg %p56
      %p152 = pneg %p53
      %p153 = pneg %p77
      %p154 = pneg %p74
      %p155 = pneg %p103
      %p156 = pneg %p100
      %s157 = smul.u32 32, %s14
      %p158 = scmp.lt.s32.totalorder %s157, 63
      %s159 = scalar_select %p158, %s157, 63
      %s160 = smul.addr %s159, 8
      %s161 = scalar_lea.vmem %s3, %s160
      %s162 = smul.u32 32, %s14
      %p163 = scmp.lt.s32.totalorder %s162, 63
      %s164 = scalar_select %p163, %s162, 63
      %s165 = smul.addr %s164, 8
      %s166 = scalar_lea.vmem %s0, %s165
      %s167 = smul.u32 32, %s14
      %s168 = smul.u32 32, %s14
      %p169 = scmp.lt.s32.totalorder %s168, 63
      %s170 = scalar_select %p169, %s168, 63
      %s171 = smul.addr %s170, 8
      %s172 = scalar_lea.vmem %s3, %s171
      %s173 = smul.u32 32, %s14
      %v175 = vld [vmem:[%s1] sm:$0xf]
      %v176 = vld [vmem:[%s1 + $0x4] sm:$0xf]
      %v177 = vld [vmem:[%s1 + $0x8] sm:$0xf]
      %v178 = vld [vmem:[%s1 + $0xc] sm:$0xf]
      %v179 = vld [vmem:[%s1 + $0x10] sm:$0xf]
      %v180 = vld [vmem:[%s1 + $0x14] sm:$0xf]
      %v181 = vld [vmem:[%s1 + $0x18] sm:$0xf]
      %v182 = vld [vmem:[%s1 + $0x1c] sm:$0xf]
      %v183 = vld [vmem:[%s1 + $0x20] sm:$0xf]
      %v184 = vld [vmem:[%s1 + $0x24] sm:$0xf]
      %v185 = vld [vmem:[%s1 + $0x28] sm:$0xf]
      %v186 = vld [vmem:[%s1 + $0x2c] sm:$0xf]
      %v187 = vld [vmem:[%s1 + $0x30] sm:$0xf]
      %v188 = vld [vmem:[%s1 + $0x34] sm:$0xf]
      %v189 = vld [vmem:[%s1 + $0x38] sm:$0xf]
      %v190 = vld [vmem:[%s1 + $0x3c] sm:$0xf]
      %v191 = vld [vmem:[%s1 + $0x40] sm:$0xf]
      %v192 = vld [vmem:[%s1 + $0x44] sm:$0xf]
      %v193 = vld [vmem:[%s1 + $0x48] sm:$0xf]
      %v194 = vld [vmem:[%s1 + $0x4c] sm:$0xf]
      %v195 = vld [vmem:[%s1 + $0x50] sm:$0xf]
      %v196 = vld [vmem:[%s1 + $0x54] sm:$0xf]
      %v197 = vld [vmem:[%s1 + $0x58] sm:$0xf]
      %v198 = vld [vmem:[%s1 + $0x5c] sm:$0xf]
      %v199 = vld [vmem:[%s1 + $0x60] sm:$0xf]
      %v200 = vld [vmem:[%s1 + $0x64] sm:$0xf]
      %v201 = vld [vmem:[%s1 + $0x68] sm:$0xf]
      %v202 = vld [vmem:[%s1 + $0x6c] sm:$0xf]
      %v203 = vld [vmem:[%s1 + $0x70] sm:$0xf]
      %v204 = vld [vmem:[%s1 + $0x74] sm:$0xf]
      %v205 = vld [vmem:[%s1 + $0x78] sm:$0xf]
      %v206 = vld [vmem:[%s1 + $0x7c] sm:$0xf]
      %v207 = vld [vmem:[%s1 + $0x80] sm:$0xf]
      %v208 = vld [vmem:[%s1 + $0x84] sm:$0xf]
      %v209 = vld [vmem:[%s1 + $0x88] sm:$0xf]
      %v210 = vld [vmem:[%s1 + $0x8c] sm:$0xf]
      %v211 = vld [vmem:[%s1 + $0x90] sm:$0xf]
      %v212 = vld [vmem:[%s1 + $0x94] sm:$0xf]
      %v213 = vld [vmem:[%s1 + $0x98] sm:$0xf]
      %v214 = vld [vmem:[%s1 + $0x9c] sm:$0xf]
      %v215 = vld [vmem:[%s1 + $0xa0] sm:$0xf]
      %v216 = vld [vmem:[%s1 + $0xa4] sm:$0xf]
      %v217 = vld [vmem:[%s1 + $0xa8] sm:$0xf]
      %v218 = vld [vmem:[%s1 + $0xac] sm:$0xf]
      %v219 = vld [vmem:[%s1 + $0xb0] sm:$0xf]
      %v220 = vld [vmem:[%s1 + $0xb4] sm:$0xf]
      %v221 = vld [vmem:[%s1 + $0xb8] sm:$0xf]
      %v222 = vld [vmem:[%s1 + $0xbc] sm:$0xf]
      %v223 = vld [vmem:[%s1 + $0xc0] sm:$0xf]
      %v224 = vld [vmem:[%s1 + $0xc4] sm:$0xf]
      %v225 = vld [vmem:[%s1 + $0xc8] sm:$0xf]
      %v226 = vld [vmem:[%s1 + $0xcc] sm:$0xf]
      %v227 = vld [vmem:[%s1 + $0xd0] sm:$0xf]
      %v228 = vld [vmem:[%s1 + $0xd4] sm:$0xf]
      %v229 = vld [vmem:[%s1 + $0xd8] sm:$0xf]
      %v230 = vld [vmem:[%s1 + $0xdc] sm:$0xf]
      %v231 = vld [vmem:[%s1 + $0xe0] sm:$0xf]
      %v232 = vld [vmem:[%s1 + $0xe4] sm:$0xf]
      %v233 = vld [vmem:[%s1 + $0xe8] sm:$0xf]
      %v234 = vld [vmem:[%s1 + $0xec] sm:$0xf]
      %v235 = vld [vmem:[%s1 + $0xf0] sm:$0xf]
      %v236 = vld [vmem:[%s1 + $0xf4] sm:$0xf]
      %v237 = vld [vmem:[%s1 + $0xf8] sm:$0xf]
      %v238 = vld [vmem:[%s1 + $0xfc] sm:$0xf]
      %v239 = vld [vmem:[%s1 + $0x100] sm:$0xf]
      %v240 = vld [vmem:[%s1 + $0x104] sm:$0xf]
      %v241 = vld [vmem:[%s1 + $0x108] sm:$0xf]
      %v242 = vld [vmem:[%s1 + $0x10c] sm:$0xf]
      %v243 = vld [vmem:[%s1 + $0x110] sm:$0xf]
      %v244 = vld [vmem:[%s1 + $0x114] sm:$0xf]
      %v245 = vld [vmem:[%s1 + $0x118] sm:$0xf]
      %v246 = vld [vmem:[%s1 + $0x11c] sm:$0xf]
      %v247 = vld [vmem:[%s1 + $0x120] sm:$0xf]
      %v248 = vld [vmem:[%s1 + $0x124] sm:$0xf]
      %v249 = vld [vmem:[%s1 + $0x128] sm:$0xf]
      %v250 = vld [vmem:[%s1 + $0x12c] sm:$0xf]
      %v251 = vld [vmem:[%s1 + $0x130] sm:$0xf]
      %v252 = vld [vmem:[%s1 + $0x134] sm:$0xf]
      %v253 = vld [vmem:[%s1 + $0x138] sm:$0xf]
      %v254 = vld [vmem:[%s1 + $0x13c] sm:$0xf]
      %v255 = vld [vmem:[%s1 + $0x140] sm:$0xf]
      %v256 = vld [vmem:[%s1 + $0x144] sm:$0xf]
      %v257 = vld [vmem:[%s1 + $0x148] sm:$0xf]
      %v258 = vld [vmem:[%s1 + $0x14c] sm:$0xf]
      %v259 = vld [vmem:[%s1 + $0x150] sm:$0xf]
      %v260 = vld [vmem:[%s1 + $0x154] sm:$0xf]
      %v261 = vld [vmem:[%s2] sm:$0x1]
      %v262 = vld [vmem:[%s2 + $0x1] sm:$0x1]
      %v263 = vld [vmem:[%s2 + $0x2] sm:$0x1]
      %v264 = vld [vmem:[%s2 + $0x3] sm:$0x1]
      %v265 = vld [vmem:[%s2 + $0x4] sm:$0x1]
      %v266 = vld [vmem:[%s2 + $0x5] sm:$0x1]
      %v267 = vld [vmem:[%s166] sm:$0xff]
      %v268 = vld [vmem:[%s166 + $0x8] sm:$0xff]
      %v269 = vld [vmem:[%s166 + $0x10] sm:$0xff]
      %v270 = vld [vmem:[%s166 + $0x18] sm:$0xff]
      %v271 = vld [vmem:[%s166 + $0x20] sm:$0xff]
      %v272 = vld [vmem:[%s166 + $0x28] sm:$0xff]
      %v273 = vld [vmem:[%s166 + $0x30] sm:$0xff]
      %v274 = vld [vmem:[%s166 + $0x38] sm:$0xff]
      %v275 = vld [vmem:[%s166 + $0x40] sm:$0xff]
      %v276 = vld [vmem:[%s166 + $0x48] sm:$0xff]
      %v277 = vld [vmem:[%s166 + $0x50] sm:$0xff]
      %v278 = vld [vmem:[%s166 + $0x58] sm:$0xff]
      %v279 = vld [vmem:[%s166 + $0x60] sm:$0xff]
      %v280 = vld [vmem:[%s166 + $0x68] sm:$0xff]
      %v281 = vld [vmem:[%s166 + $0x70] sm:$0xff]
      %v282 = vld [vmem:[%s166 + $0x78] sm:$0xff]
      %v283 = vld [vmem:[%s166 + $0x80] sm:$0xff]
      %v284 = vld [vmem:[%s166 + $0x88] sm:$0xff]
      %v285 = vld [vmem:[%s166 + $0x90] sm:$0xff]
      %v286 = vld [vmem:[%s166 + $0x98] sm:$0xff]
      %v287 = vld [vmem:[%s166 + $0xa0] sm:$0xff]
      %v288 = vld [vmem:[%s166 + $0xa8] sm:$0xff]
      %v289 = vld [vmem:[%s166 + $0xb0] sm:$0xff]
      %v290 = vld [vmem:[%s166 + $0xb8] sm:$0xff]
      %v291 = vld [vmem:[%s166 + $0xc0] sm:$0xff]
      %v292 = vld [vmem:[%s166 + $0xc8] sm:$0xff]
      %v293 = vld [vmem:[%s166 + $0xd0] sm:$0xff]
      %v294 = vld [vmem:[%s166 + $0xd8] sm:$0xff]
      %v295 = vld [vmem:[%s166 + $0xe0] sm:$0xff]
      %v296 = vld [vmem:[%s166 + $0xe8] sm:$0xff]
      %v297 = vld [vmem:[%s166 + $0xf0] sm:$0xff]
      %v298 = vld [vmem:[%s166 + $0xf8] sm:$0xff]
      %v299 = vpack.c.bf16 %v268, %v267
      %v300 = vpack.c.bf16 %v270, %v269
      %v301 = vpack.c.bf16 %v272, %v271
      %v302 = vpack.c.bf16 %v274, %v273
      %v303 = vpack.c.bf16 %v276, %v275
      %v304 = vpack.c.bf16 %v278, %v277
      %v305 = vpack.c.bf16 %v280, %v279
      %v306 = vpack.c.bf16 %v282, %v281
      %v307 = vpack.c.bf16 %v284, %v283
      %v308 = vpack.c.bf16 %v286, %v285
      %v309 = vpack.c.bf16 %v288, %v287
      %v310 = vpack.c.bf16 %v290, %v289
      %v311 = vpack.c.bf16 %v292, %v291
      %v312 = vpack.c.bf16 %v294, %v293
      %v313 = vpack.c.bf16 %v296, %v295
      %v314 = vpack.c.bf16 %v298, %v297
      %v315 = vperm.slane %v261, 0
      %v322 = vunpack.c.l.b16 %v175
      %v323 = vunpack.c.l.b16 %v176
      %v324 = vunpack.c.l.b16 %v177
      %v325 = vunpack.c.l.b16 %v178
      %v326 = vunpack.c.l.b16 %v179
      %v327 = vunpack.c.l.b16 %v180
      %v328 = vpack.c.b16 %v323, %v322
      %v329 = vpack.c.b16 %v325, %v324
      %v330 = vpack.c.b16 %v327, %v326
      %vm334 = vcmask 392192
      %v336 = vsel %vm334, %v299, 0
      %v339 = vsel %vm334, %v300, 0
      %v342 = vsel %vm334, %v301, 0
      %v345 = vsel %vm334, %v302, 0
      %v348 = vsel %vm334, %v303, 0
      %v351 = vsel %vm334, %v304, 0
      %v354 = vsel %vm334, %v305, 0
      %v357 = vsel %vm334, %v306, 0
      %v360 = vsel %vm334, %v307, 0
      %v363 = vsel %vm334, %v308, 0
      %v366 = vsel %vm334, %v309, 0
      %v369 = vsel %vm334, %v310, 0
      %v372 = vsel %vm334, %v311, 0
      %v375 = vsel %vm334, %v312, 0
      %v378 = vsel %vm334, %v313, 0
      %v381 = vsel %vm334, %v314, 0
      %383 = vmatpush.bf16.msra.mxu0 0
      %384 = vmatpush.bf16.msra.mxu0 0
      %385 = vmatpush.bf16.msra.mxu0 0
      %386 = vmatpush.bf16.msra.mxu0 0
      %387 = vmatpush.bf16.msra.mxu0 0
      %388 = vmatpush.bf16.msra.mxu0 %v330
      %389 = vmatpush.bf16.msra.mxu0 %v329
      %390 = vmatpush.bf16.msra.mxu0 %v328
      %391 = vmatmul.bf16.gmra.mxu0 %v336
      %v392 = vpop.f32.mrf.mxu0
      %v393 = vadd.f32 %v315, %v392
      %v394 = vpop.f32.mrf.mxu0
      %v395 = vadd.f32 %v315, %v394
      %396 = vmatmul.bf16.gmra.mxu0 %v339
      %v397 = vpop.f32.mrf.mxu0
      %v398 = vadd.f32 %v315, %v397
      %v399 = vpop.f32.mrf.mxu0
      %v400 = vadd.f32 %v315, %v399
      %401 = vmatmul.bf16.gmra.mxu0 %v342
      %v402 = vpop.f32.mrf.mxu0
      %v403 = vadd.f32 %v315, %v402
      %v404 = vpop.f32.mrf.mxu0
      %v405 = vadd.f32 %v315, %v404
      %406 = vmatmul.bf16.gmra.mxu0 %v345
      %v407 = vpop.f32.mrf.mxu0
      %v408 = vadd.f32 %v315, %v407
      %v409 = vpop.f32.mrf.mxu0
      %v410 = vadd.f32 %v315, %v409
      %411 = vmatmul.bf16.gmra.mxu0 %v348
      %v412 = vpop.f32.mrf.mxu0
      %v413 = vadd.f32 %v315, %v412
      %v414 = vpop.f32.mrf.mxu0
      %v415 = vadd.f32 %v315, %v414
      %416 = vmatmul.bf16.gmra.mxu0 %v351
      %v417 = vpop.f32.mrf.mxu0
      %v418 = vadd.f32 %v315, %v417
      %v419 = vpop.f32.mrf.mxu0
      %v420 = vadd.f32 %v315, %v419
      %421 = vmatmul.bf16.gmra.mxu0 %v354
      %v422 = vpop.f32.mrf.mxu0
      %v423 = vadd.f32 %v315, %v422
      %v424 = vpop.f32.mrf.mxu0
      %v425 = vadd.f32 %v315, %v424
      %426 = vmatmul.bf16.gmra.mxu0 %v357
      %v427 = vpop.f32.mrf.mxu0
      %v428 = vadd.f32 %v315, %v427
      %v429 = vpop.f32.mrf.mxu0
      %v430 = vadd.f32 %v315, %v429
      %431 = vmatmul.bf16.gmra.mxu0 %v360
      %v432 = vpop.f32.mrf.mxu0
      %v433 = vadd.f32 %v315, %v432
      %v434 = vpop.f32.mrf.mxu0
      %v435 = vadd.f32 %v315, %v434
      %436 = vmatmul.bf16.gmra.mxu0 %v363
      %v437 = vpop.f32.mrf.mxu0
      %v438 = vadd.f32 %v315, %v437
      %v439 = vpop.f32.mrf.mxu0
      %v440 = vadd.f32 %v315, %v439
      %441 = vmatmul.bf16.gmra.mxu0 %v366
      %v442 = vpop.f32.mrf.mxu0
      %v443 = vadd.f32 %v315, %v442
      %v444 = vpop.f32.mrf.mxu0
      %v445 = vadd.f32 %v315, %v444
      %446 = vmatmul.bf16.gmra.mxu0 %v369
      %v447 = vpop.f32.mrf.mxu0
      %v448 = vadd.f32 %v315, %v447
      %v449 = vpop.f32.mrf.mxu0
      %v450 = vadd.f32 %v315, %v449
      %451 = vmatmul.bf16.gmra.mxu0 %v372
      %v452 = vpop.f32.mrf.mxu0
      %v453 = vadd.f32 %v315, %v452
      %v454 = vpop.f32.mrf.mxu0
      %v455 = vadd.f32 %v315, %v454
      %456 = vmatmul.bf16.gmra.mxu0 %v375
      %v457 = vpop.f32.mrf.mxu0
      %v458 = vadd.f32 %v315, %v457
      %v459 = vpop.f32.mrf.mxu0
      %v460 = vadd.f32 %v315, %v459
      %461 = vmatmul.bf16.gmra.mxu0 %v378
      %v462 = vpop.f32.mrf.mxu0
      %v463 = vadd.f32 %v315, %v462
      %v464 = vpop.f32.mrf.mxu0
      %v465 = vadd.f32 %v315, %v464
      %466 = vmatmul.bf16.gmra.mxu0 %v381
      %v467 = vpop.f32.mrf.mxu0
      %v468 = vadd.f32 %v315, %v467
      %v469 = vpop.f32.mrf.mxu0
      %v470 = vadd.f32 %v315, %v469
      %471 = vdwg.mxu0
      %v472 = vmax.f32 %v393, 0.0
      %v473 = vmax.f32 %v395, 0.0
      %v474 = vmax.f32 %v398, 0.0
      %v475 = vmax.f32 %v400, 0.0
      %v476 = vmax.f32 %v403, 0.0
      %v477 = vmax.f32 %v405, 0.0
      %v478 = vmax.f32 %v408, 0.0
      %v479 = vmax.f32 %v410, 0.0
      %v480 = vmax.f32 %v413, 0.0
      %v481 = vmax.f32 %v415, 0.0
      %v482 = vmax.f32 %v418, 0.0
      %v483 = vmax.f32 %v420, 0.0
      %v484 = vmax.f32 %v423, 0.0
      %v485 = vmax.f32 %v425, 0.0
      %v486 = vmax.f32 %v428, 0.0
      %v487 = vmax.f32 %v430, 0.0
      %v488 = vmax.f32 %v433, 0.0
      %v489 = vmax.f32 %v435, 0.0
      %v490 = vmax.f32 %v438, 0.0
      %v491 = vmax.f32 %v440, 0.0
      %v492 = vmax.f32 %v443, 0.0
      %v493 = vmax.f32 %v445, 0.0
      %v494 = vmax.f32 %v448, 0.0
      %v495 = vmax.f32 %v450, 0.0
      %v496 = vmax.f32 %v453, 0.0
      %v497 = vmax.f32 %v455, 0.0
      %v498 = vmax.f32 %v458, 0.0
      %v499 = vmax.f32 %v460, 0.0
      %v500 = vmax.f32 %v463, 0.0
      %v501 = vmax.f32 %v465, 0.0
      %v502 = vmax.f32 %v468, 0.0
      %v503 = vmax.f32 %v470, 0.0
      %v504 = vpack.c.bf16 %v473, %v472
      %v505 = vpack.c.bf16 %v475, %v474
      %v506 = vpack.c.bf16 %v477, %v476
      %v507 = vpack.c.bf16 %v479, %v478
      %v508 = vpack.c.bf16 %v481, %v480
      %v509 = vpack.c.bf16 %v483, %v482
      %v510 = vpack.c.bf16 %v485, %v484
      %v511 = vpack.c.bf16 %v487, %v486
      %v512 = vpack.c.bf16 %v489, %v488
      %v513 = vpack.c.bf16 %v491, %v490
      %v514 = vpack.c.bf16 %v493, %v492
      %v515 = vpack.c.bf16 %v495, %v494
      %v516 = vpack.c.bf16 %v497, %v496
      %v517 = vpack.c.bf16 %v499, %v498
      %v518 = vpack.c.bf16 %v501, %v500
      %v519 = vpack.c.bf16 %v503, %v502
      %v520 = vperm.slane %v262, 0
      %v537 = vunpack.c.l.b16 %v181
      %v538 = vunpack.c.l.b16 %v182
      %v539 = vunpack.c.l.b16 %v183
      %v540 = vunpack.c.l.b16 %v184
      %v541 = vunpack.c.l.b16 %v185
      %v542 = vunpack.c.l.b16 %v186
      %v543 = vunpack.c.l.b16 %v187
      %v544 = vunpack.c.l.b16 %v188
      %v545 = vunpack.c.l.b16 %v189
      %v546 = vunpack.c.l.b16 %v190
      %v547 = vunpack.c.l.b16 %v191
      %v548 = vunpack.c.l.b16 %v192
      %v549 = vunpack.c.l.b16 %v193
      %v550 = vunpack.c.l.b16 %v194
      %v551 = vunpack.c.l.b16 %v195
      %v552 = vunpack.c.l.b16 %v196
      %v553 = vpack.c.b16 %v538, %v537
      %v554 = vpack.c.b16 %v540, %v539
      %v555 = vpack.c.b16 %v542, %v541
      %v556 = vpack.c.b16 %v544, %v543
      %v557 = vpack.c.b16 %v546, %v545
      %v558 = vpack.c.b16 %v548, %v547
      %v559 = vpack.c.b16 %v550, %v549
      %v560 = vpack.c.b16 %v552, %v551
      %569 = vmatpush.bf16.msra.mxu0 %v560
      %570 = vmatpush.bf16.msra.mxu0 %v559
      %571 = vmatpush.bf16.msra.mxu0 %v558
      %572 = vmatpush.bf16.msra.mxu0 %v557
      %573 = vmatpush.bf16.msra.mxu0 %v556
      %574 = vmatpush.bf16.msra.mxu0 %v555
      %575 = vmatpush.bf16.msra.mxu0 %v554
      %576 = vmatpush.bf16.msra.mxu0 %v553
      %577 = vmatmul.bf16.gmra.mxu0 %v504
      %v578 = vpop.f32.mrf.mxu0
      %v579 = vadd.f32 %v520, %v578
      %v580 = vpop.f32.mrf.mxu0
      %v581 = vadd.f32 %v520, %v580
      %582 = vmatmul.bf16.gmra.mxu0 %v505
      %v583 = vpop.f32.mrf.mxu0
      %v584 = vadd.f32 %v520, %v583
      %v585 = vpop.f32.mrf.mxu0
      %v586 = vadd.f32 %v520, %v585
      %587 = vmatmul.bf16.gmra.mxu0 %v506
      %v588 = vpop.f32.mrf.mxu0
      %v589 = vadd.f32 %v520, %v588
      %v590 = vpop.f32.mrf.mxu0
      %v591 = vadd.f32 %v520, %v590
      %592 = vmatmul.bf16.gmra.mxu0 %v507
      %v593 = vpop.f32.mrf.mxu0
      %v594 = vadd.f32 %v520, %v593
      %v595 = vpop.f32.mrf.mxu0
      %v596 = vadd.f32 %v520, %v595
      %597 = vmatmul.bf16.gmra.mxu0 %v508
      %v598 = vpop.f32.mrf.mxu0
      %v599 = vadd.f32 %v520, %v598
      %v600 = vpop.f32.mrf.mxu0
      %v601 = vadd.f32 %v520, %v600
      %602 = vmatmul.bf16.gmra.mxu0 %v509
      %v603 = vpop.f32.mrf.mxu0
      %v604 = vadd.f32 %v520, %v603
      %v605 = vpop.f32.mrf.mxu0
      %v606 = vadd.f32 %v520, %v605
      %607 = vmatmul.bf16.gmra.mxu0 %v510
      %v608 = vpop.f32.mrf.mxu0
      %v609 = vadd.f32 %v520, %v608
      %v610 = vpop.f32.mrf.mxu0
      %v611 = vadd.f32 %v520, %v610
      %612 = vmatmul.bf16.gmra.mxu0 %v511
      %v613 = vpop.f32.mrf.mxu0
      %v614 = vadd.f32 %v520, %v613
      %v615 = vpop.f32.mrf.mxu0
      %v616 = vadd.f32 %v520, %v615
      %617 = vmatmul.bf16.gmra.mxu0 %v512
      %v618 = vpop.f32.mrf.mxu0
      %v619 = vadd.f32 %v520, %v618
      %v620 = vpop.f32.mrf.mxu0
      %v621 = vadd.f32 %v520, %v620
      %622 = vmatmul.bf16.gmra.mxu0 %v513
      %v623 = vpop.f32.mrf.mxu0
      %v624 = vadd.f32 %v520, %v623
      %v625 = vpop.f32.mrf.mxu0
      %v626 = vadd.f32 %v520, %v625
      %627 = vmatmul.bf16.gmra.mxu0 %v514
      %v628 = vpop.f32.mrf.mxu0
      %v629 = vadd.f32 %v520, %v628
      %v630 = vpop.f32.mrf.mxu0
      %v631 = vadd.f32 %v520, %v630
      %632 = vmatmul.bf16.gmra.mxu0 %v515
      %v633 = vpop.f32.mrf.mxu0
      %v634 = vadd.f32 %v520, %v633
      %v635 = vpop.f32.mrf.mxu0
      %v636 = vadd.f32 %v520, %v635
      %637 = vmatmul.bf16.gmra.mxu0 %v516
      %v638 = vpop.f32.mrf.mxu0
      %v639 = vadd.f32 %v520, %v638
      %v640 = vpop.f32.mrf.mxu0
      %v641 = vadd.f32 %v520, %v640
      %642 = vmatmul.bf16.gmra.mxu0 %v517
      %v643 = vpop.f32.mrf.mxu0
      %v644 = vadd.f32 %v520, %v643
      %v645 = vpop.f32.mrf.mxu0
      %v646 = vadd.f32 %v520, %v645
      %647 = vmatmul.bf16.gmra.mxu0 %v518
      %v648 = vpop.f32.mrf.mxu0
      %v649 = vadd.f32 %v520, %v648
      %v650 = vpop.f32.mrf.mxu0
      %v651 = vadd.f32 %v520, %v650
      %652 = vmatmul.bf16.gmra.mxu0 %v519
      %v653 = vpop.f32.mrf.mxu0
      %v654 = vadd.f32 %v520, %v653
      %v655 = vpop.f32.mrf.mxu0
      %v656 = vadd.f32 %v520, %v655
      %657 = vdwg.mxu0
      %v658 = vmax.f32 %v579, 0.0
      %v659 = vmax.f32 %v581, 0.0
      %v660 = vmax.f32 %v584, 0.0
      %v661 = vmax.f32 %v586, 0.0
      %v662 = vmax.f32 %v589, 0.0
      %v663 = vmax.f32 %v591, 0.0
      %v664 = vmax.f32 %v594, 0.0
      %v665 = vmax.f32 %v596, 0.0
      %v666 = vmax.f32 %v599, 0.0
      %v667 = vmax.f32 %v601, 0.0
      %v668 = vmax.f32 %v604, 0.0
      %v669 = vmax.f32 %v606, 0.0
      %v670 = vmax.f32 %v609, 0.0
      %v671 = vmax.f32 %v611, 0.0
      %v672 = vmax.f32 %v614, 0.0
      %v673 = vmax.f32 %v616, 0.0
      %v674 = vmax.f32 %v619, 0.0
      %v675 = vmax.f32 %v621, 0.0
      %v676 = vmax.f32 %v624, 0.0
      %v677 = vmax.f32 %v626, 0.0
      %v678 = vmax.f32 %v629, 0.0
      %v679 = vmax.f32 %v631, 0.0
      %v680 = vmax.f32 %v634, 0.0
      %v681 = vmax.f32 %v636, 0.0
      %v682 = vmax.f32 %v639, 0.0
      %v683 = vmax.f32 %v641, 0.0
      %v684 = vmax.f32 %v644, 0.0
      %v685 = vmax.f32 %v646, 0.0
      %v686 = vmax.f32 %v649, 0.0
      %v687 = vmax.f32 %v651, 0.0
      %v688 = vmax.f32 %v654, 0.0
      %v689 = vmax.f32 %v656, 0.0
      %v690 = vadd.f32 %v472, %v658
      %v691 = vadd.f32 %v473, %v659
      %v692 = vadd.f32 %v474, %v660
      %v693 = vadd.f32 %v475, %v661
      %v694 = vadd.f32 %v476, %v662
      %v695 = vadd.f32 %v477, %v663
      %v696 = vadd.f32 %v478, %v664
      %v697 = vadd.f32 %v479, %v665
      %v698 = vadd.f32 %v480, %v666
      %v699 = vadd.f32 %v481, %v667
      %v700 = vadd.f32 %v482, %v668
      %v701 = vadd.f32 %v483, %v669
      %v702 = vadd.f32 %v484, %v670
      %v703 = vadd.f32 %v485, %v671
      %v704 = vadd.f32 %v486, %v672
      %v705 = vadd.f32 %v487, %v673
      %v706 = vadd.f32 %v488, %v674
      %v707 = vadd.f32 %v489, %v675
      %v708 = vadd.f32 %v490, %v676
      %v709 = vadd.f32 %v491, %v677
      %v710 = vadd.f32 %v492, %v678
      %v711 = vadd.f32 %v493, %v679
      %v712 = vadd.f32 %v494, %v680
      %v713 = vadd.f32 %v495, %v681
      %v714 = vadd.f32 %v496, %v682
      %v715 = vadd.f32 %v497, %v683
      %v716 = vadd.f32 %v498, %v684
      %v717 = vadd.f32 %v499, %v685
      %v718 = vadd.f32 %v500, %v686
      %v719 = vadd.f32 %v501, %v687
      %v720 = vadd.f32 %v502, %v688
      %v721 = vadd.f32 %v503, %v689
      %v722 = vpack.c.bf16 %v691, %v690
      %v723 = vpack.c.bf16 %v693, %v692
      %v724 = vpack.c.bf16 %v695, %v694
      %v725 = vpack.c.bf16 %v697, %v696
      %v726 = vpack.c.bf16 %v699, %v698
      %v727 = vpack.c.bf16 %v701, %v700
      %v728 = vpack.c.bf16 %v703, %v702
      %v729 = vpack.c.bf16 %v705, %v704
      %v730 = vpack.c.bf16 %v707, %v706
      %v731 = vpack.c.bf16 %v709, %v708
      %v732 = vpack.c.bf16 %v711, %v710
      %v733 = vpack.c.bf16 %v713, %v712
      %v734 = vpack.c.bf16 %v715, %v714
      %v735 = vpack.c.bf16 %v717, %v716
      %v736 = vpack.c.bf16 %v719, %v718
      %v737 = vpack.c.bf16 %v721, %v720
      %v738 = vperm.slane %v263, 0
      %v755 = vunpack.c.l.b16 %v197
      %v756 = vunpack.c.l.b16 %v198
      %v757 = vunpack.c.l.b16 %v199
      %v758 = vunpack.c.l.b16 %v200
      %v759 = vunpack.c.l.b16 %v201
      %v760 = vunpack.c.l.b16 %v202
      %v761 = vunpack.c.l.b16 %v203
      %v762 = vunpack.c.l.b16 %v204
      %v763 = vunpack.c.l.b16 %v205
      %v764 = vunpack.c.l.b16 %v206
      %v765 = vunpack.c.l.b16 %v207
      %v766 = vunpack.c.l.b16 %v208
      %v767 = vunpack.c.l.b16 %v209
      %v768 = vunpack.c.l.b16 %v210
      %v769 = vunpack.c.l.b16 %v211
      %v770 = vunpack.c.l.b16 %v212
      %v771 = vpack.c.b16 %v756, %v755
      %v772 = vpack.c.b16 %v758, %v757
      %v773 = vpack.c.b16 %v760, %v759
      %v774 = vpack.c.b16 %v762, %v761
      %v775 = vpack.c.b16 %v764, %v763
      %v776 = vpack.c.b16 %v766, %v765
      %v777 = vpack.c.b16 %v768, %v767
      %v778 = vpack.c.b16 %v770, %v769
      %787 = vmatpush.bf16.msra.mxu0 %v778
      %788 = vmatpush.bf16.msra.mxu0 %v777
      %789 = vmatpush.bf16.msra.mxu0 %v776
      %790 = vmatpush.bf16.msra.mxu0 %v775
      %791 = vmatpush.bf16.msra.mxu0 %v774
      %792 = vmatpush.bf16.msra.mxu0 %v773
      %793 = vmatpush.bf16.msra.mxu0 %v772
      %794 = vmatpush.bf16.msra.mxu0 %v771
      %795 = vmatmul.bf16.gmra.mxu0 %v722
      %v796 = vpop.f32.mrf.mxu0
      %v797 = vadd.f32 %v738, %v796
      %v798 = vpop.f32.mrf.mxu0
      %v799 = vadd.f32 %v738, %v798
      %800 = vmatmul.bf16.gmra.mxu0 %v723
      %v801 = vpop.f32.mrf.mxu0
      %v802 = vadd.f32 %v738, %v801
      %v803 = vpop.f32.mrf.mxu0
      %v804 = vadd.f32 %v738, %v803
      %805 = vmatmul.bf16.gmra.mxu0 %v724
      %v806 = vpop.f32.mrf.mxu0
      %v807 = vadd.f32 %v738, %v806
      %v808 = vpop.f32.mrf.mxu0
      %v809 = vadd.f32 %v738, %v808
      %810 = vmatmul.bf16.gmra.mxu0 %v725
      %v811 = vpop.f32.mrf.mxu0
      %v812 = vadd.f32 %v738, %v811
      %v813 = vpop.f32.mrf.mxu0
      %v814 = vadd.f32 %v738, %v813
      %815 = vmatmul.bf16.gmra.mxu0 %v726
      %v816 = vpop.f32.mrf.mxu0
      %v817 = vadd.f32 %v738, %v816
      %v818 = vpop.f32.mrf.mxu0
      %v819 = vadd.f32 %v738, %v818
      %820 = vmatmul.bf16.gmra.mxu0 %v727
      %v821 = vpop.f32.mrf.mxu0
      %v822 = vadd.f32 %v738, %v821
      %v823 = vpop.f32.mrf.mxu0
      %v824 = vadd.f32 %v738, %v823
      %825 = vmatmul.bf16.gmra.mxu0 %v728
      %v826 = vpop.f32.mrf.mxu0
      %v827 = vadd.f32 %v738, %v826
      %v828 = vpop.f32.mrf.mxu0
      %v829 = vadd.f32 %v738, %v828
      %830 = vmatmul.bf16.gmra.mxu0 %v729
      %v831 = vpop.f32.mrf.mxu0
      %v832 = vadd.f32 %v738, %v831
      %v833 = vpop.f32.mrf.mxu0
      %v834 = vadd.f32 %v738, %v833
      %835 = vmatmul.bf16.gmra.mxu0 %v730
      %v836 = vpop.f32.mrf.mxu0
      %v837 = vadd.f32 %v738, %v836
      %v838 = vpop.f32.mrf.mxu0
      %v839 = vadd.f32 %v738, %v838
      %840 = vmatmul.bf16.gmra.mxu0 %v731
      %v841 = vpop.f32.mrf.mxu0
      %v842 = vadd.f32 %v738, %v841
      %v843 = vpop.f32.mrf.mxu0
      %v844 = vadd.f32 %v738, %v843
      %845 = vmatmul.bf16.gmra.mxu0 %v732
      %v846 = vpop.f32.mrf.mxu0
      %v847 = vadd.f32 %v738, %v846
      %v848 = vpop.f32.mrf.mxu0
      %v849 = vadd.f32 %v738, %v848
      %850 = vmatmul.bf16.gmra.mxu0 %v733
      %v851 = vpop.f32.mrf.mxu0
      %v852 = vadd.f32 %v738, %v851
      %v853 = vpop.f32.mrf.mxu0
      %v854 = vadd.f32 %v738, %v853
      %855 = vmatmul.bf16.gmra.mxu0 %v734
      %v856 = vpop.f32.mrf.mxu0
      %v857 = vadd.f32 %v738, %v856
      %v858 = vpop.f32.mrf.mxu0
      %v859 = vadd.f32 %v738, %v858
      %860 = vmatmul.bf16.gmra.mxu0 %v735
      %v861 = vpop.f32.mrf.mxu0
      %v862 = vadd.f32 %v738, %v861
      %v863 = vpop.f32.mrf.mxu0
      %v864 = vadd.f32 %v738, %v863
      %865 = vmatmul.bf16.gmra.mxu0 %v736
      %v866 = vpop.f32.mrf.mxu0
      %v867 = vadd.f32 %v738, %v866
      %v868 = vpop.f32.mrf.mxu0
      %v869 = vadd.f32 %v738, %v868
      %870 = vmatmul.bf16.gmra.mxu0 %v737
      %v871 = vpop.f32.mrf.mxu0
      %v872 = vadd.f32 %v738, %v871
      %v873 = vpop.f32.mrf.mxu0
      %v874 = vadd.f32 %v738, %v873
      %875 = vdwg.mxu0
      %v876 = vpack.c.bf16 %v799, %v797
      %v877 = vpack.c.bf16 %v804, %v802
      %v878 = vpack.c.bf16 %v809, %v807
      %v879 = vpack.c.bf16 %v814, %v812
      %v880 = vpack.c.bf16 %v819, %v817
      %v881 = vpack.c.bf16 %v824, %v822
      %v882 = vpack.c.bf16 %v829, %v827
      %v883 = vpack.c.bf16 %v834, %v832
      %v884 = vpack.c.bf16 %v839, %v837
      %v885 = vpack.c.bf16 %v844, %v842
      %v886 = vpack.c.bf16 %v849, %v847
      %v887 = vpack.c.bf16 %v854, %v852
      %v888 = vpack.c.bf16 %v859, %v857
      %v889 = vpack.c.bf16 %v864, %v862
      %v890 = vpack.c.bf16 %v869, %v867
      %v891 = vpack.c.bf16 %v874, %v872
      %v892 = vperm.slane %v264, 0
      %v909 = vunpack.c.l.b16 %v213
      %v910 = vunpack.c.l.b16 %v214
      %v911 = vunpack.c.l.b16 %v215
      %v912 = vunpack.c.l.b16 %v216
      %v913 = vunpack.c.l.b16 %v217
      %v914 = vunpack.c.l.b16 %v218
      %v915 = vunpack.c.l.b16 %v219
      %v916 = vunpack.c.l.b16 %v220
      %v917 = vunpack.c.l.b16 %v221
      %v918 = vunpack.c.l.b16 %v222
      %v919 = vunpack.c.l.b16 %v223
      %v920 = vunpack.c.l.b16 %v224
      %v921 = vunpack.c.l.b16 %v225
      %v922 = vunpack.c.l.b16 %v226
      %v923 = vunpack.c.l.b16 %v227
      %v924 = vunpack.c.l.b16 %v228
      %v925 = vpack.c.b16 %v910, %v909
      %v926 = vpack.c.b16 %v912, %v911
      %v927 = vpack.c.b16 %v914, %v913
      %v928 = vpack.c.b16 %v916, %v915
      %v929 = vpack.c.b16 %v918, %v917
      %v930 = vpack.c.b16 %v920, %v919
      %v931 = vpack.c.b16 %v922, %v921
      %v932 = vpack.c.b16 %v924, %v923
      %941 = vmatpush.bf16.msra.mxu0 %v932
      %942 = vmatpush.bf16.msra.mxu0 %v931
      %943 = vmatpush.bf16.msra.mxu0 %v930
      %944 = vmatpush.bf16.msra.mxu0 %v929
      %945 = vmatpush.bf16.msra.mxu0 %v928
      %946 = vmatpush.bf16.msra.mxu0 %v927
      %947 = vmatpush.bf16.msra.mxu0 %v926
      %948 = vmatpush.bf16.msra.mxu0 %v925
      %949 = vmatmul.bf16.gmra.mxu0 %v876
      %v950 = vpop.f32.mrf.mxu0
      %v951 = vadd.f32 %v892, %v950
      %v952 = vpop.f32.mrf.mxu0
      %v953 = vadd.f32 %v892, %v952
      %954 = vmatmul.bf16.gmra.mxu0 %v877
      %v955 = vpop.f32.mrf.mxu0
      %v956 = vadd.f32 %v892, %v955
      %v957 = vpop.f32.mrf.mxu0
      %v958 = vadd.f32 %v892, %v957
      %959 = vmatmul.bf16.gmra.mxu0 %v878
      %v960 = vpop.f32.mrf.mxu0
      %v961 = vadd.f32 %v892, %v960
      %v962 = vpop.f32.mrf.mxu0
      %v963 = vadd.f32 %v892, %v962
      %964 = vmatmul.bf16.gmra.mxu0 %v879
      %v965 = vpop.f32.mrf.mxu0
      %v966 = vadd.f32 %v892, %v965
      %v967 = vpop.f32.mrf.mxu0
      %v968 = vadd.f32 %v892, %v967
      %969 = vmatmul.bf16.gmra.mxu0 %v880
      %v970 = vpop.f32.mrf.mxu0
      %v971 = vadd.f32 %v892, %v970
      %v972 = vpop.f32.mrf.mxu0
      %v973 = vadd.f32 %v892, %v972
      %974 = vmatmul.bf16.gmra.mxu0 %v881
      %v975 = vpop.f32.mrf.mxu0
      %v976 = vadd.f32 %v892, %v975
      %v977 = vpop.f32.mrf.mxu0
      %v978 = vadd.f32 %v892, %v977
      %979 = vmatmul.bf16.gmra.mxu0 %v882
      %v980 = vpop.f32.mrf.mxu0
      %v981 = vadd.f32 %v892, %v980
      %v982 = vpop.f32.mrf.mxu0
      %v983 = vadd.f32 %v892, %v982
      %984 = vmatmul.bf16.gmra.mxu0 %v883
      %v985 = vpop.f32.mrf.mxu0
      %v986 = vadd.f32 %v892, %v985
      %v987 = vpop.f32.mrf.mxu0
      %v988 = vadd.f32 %v892, %v987
      %989 = vmatmul.bf16.gmra.mxu0 %v884
      %v990 = vpop.f32.mrf.mxu0
      %v991 = vadd.f32 %v892, %v990
      %v992 = vpop.f32.mrf.mxu0
      %v993 = vadd.f32 %v892, %v992
      %994 = vmatmul.bf16.gmra.mxu0 %v885
      %v995 = vpop.f32.mrf.mxu0
      %v996 = vadd.f32 %v892, %v995
      %v997 = vpop.f32.mrf.mxu0
      %v998 = vadd.f32 %v892, %v997
      %999 = vmatmul.bf16.gmra.mxu0 %v886
      %v1000 = vpop.f32.mrf.mxu0
      %v1001 = vadd.f32 %v892, %v1000
      %v1002 = vpop.f32.mrf.mxu0
      %v1003 = vadd.f32 %v892, %v1002
      %1004 = vmatmul.bf16.gmra.mxu0 %v887
      %v1005 = vpop.f32.mrf.mxu0
      %v1006 = vadd.f32 %v892, %v1005
      %v1007 = vpop.f32.mrf.mxu0
      %v1008 = vadd.f32 %v892, %v1007
      %1009 = vmatmul.bf16.gmra.mxu0 %v888
      %v1010 = vpop.f32.mrf.mxu0
      %v1011 = vadd.f32 %v892, %v1010
      %v1012 = vpop.f32.mrf.mxu0
      %v1013 = vadd.f32 %v892, %v1012
      %1014 = vmatmul.bf16.gmra.mxu0 %v889
      %v1015 = vpop.f32.mrf.mxu0
      %v1016 = vadd.f32 %v892, %v1015
      %v1017 = vpop.f32.mrf.mxu0
      %v1018 = vadd.f32 %v892, %v1017
      %1019 = vmatmul.bf16.gmra.mxu0 %v890
      %v1020 = vpop.f32.mrf.mxu0
      %v1021 = vadd.f32 %v892, %v1020
      %v1022 = vpop.f32.mrf.mxu0
      %v1023 = vadd.f32 %v892, %v1022
      %1024 = vmatmul.bf16.gmra.mxu0 %v891
      %v1025 = vpop.f32.mrf.mxu0
      %v1026 = vadd.f32 %v892, %v1025
      %v1027 = vpop.f32.mrf.mxu0
      %v1028 = vadd.f32 %v892, %v1027
      %1029 = vdwg.mxu0
      %v1030 = vmax.f32 %v951, 0.0
      %v1031 = vmax.f32 %v953, 0.0
      %v1032 = vmax.f32 %v956, 0.0
      %v1033 = vmax.f32 %v958, 0.0
      %v1034 = vmax.f32 %v961, 0.0
      %v1035 = vmax.f32 %v963, 0.0
      %v1036 = vmax.f32 %v966, 0.0
      %v1037 = vmax.f32 %v968, 0.0
      %v1038 = vmax.f32 %v971, 0.0
      %v1039 = vmax.f32 %v973, 0.0
      %v1040 = vmax.f32 %v976, 0.0
      %v1041 = vmax.f32 %v978, 0.0
      %v1042 = vmax.f32 %v981, 0.0
      %v1043 = vmax.f32 %v983, 0.0
      %v1044 = vmax.f32 %v986, 0.0
      %v1045 = vmax.f32 %v988, 0.0
      %v1046 = vmax.f32 %v991, 0.0
      %v1047 = vmax.f32 %v993, 0.0
      %v1048 = vmax.f32 %v996, 0.0
      %v1049 = vmax.f32 %v998, 0.0
      %v1050 = vmax.f32 %v1001, 0.0
      %v1051 = vmax.f32 %v1003, 0.0
      %v1052 = vmax.f32 %v1006, 0.0
      %v1053 = vmax.f32 %v1008, 0.0
      %v1054 = vmax.f32 %v1011, 0.0
      %v1055 = vmax.f32 %v1013, 0.0
      %v1056 = vmax.f32 %v1016, 0.0
      %v1057 = vmax.f32 %v1018, 0.0
      %v1058 = vmax.f32 %v1021, 0.0
      %v1059 = vmax.f32 %v1023, 0.0
      %v1060 = vmax.f32 %v1026, 0.0
      %v1061 = vmax.f32 %v1028, 0.0
      %v1062 = vpack.c.bf16 %v1031, %v1030
      %v1063 = vpack.c.bf16 %v1033, %v1032
      %v1064 = vpack.c.bf16 %v1035, %v1034
      %v1065 = vpack.c.bf16 %v1037, %v1036
      %v1066 = vpack.c.bf16 %v1039, %v1038
      %v1067 = vpack.c.bf16 %v1041, %v1040
      %v1068 = vpack.c.bf16 %v1043, %v1042
      %v1069 = vpack.c.bf16 %v1045, %v1044
      %v1070 = vpack.c.bf16 %v1047, %v1046
      %v1071 = vpack.c.bf16 %v1049, %v1048
      %v1072 = vpack.c.bf16 %v1051, %v1050
      %v1073 = vpack.c.bf16 %v1053, %v1052
      %v1074 = vpack.c.bf16 %v1055, %v1054
      %v1075 = vpack.c.bf16 %v1057, %v1056
      %v1076 = vpack.c.bf16 %v1059, %v1058
      %v1077 = vpack.c.bf16 %v1061, %v1060
      %v1078 = vperm.slane %v265, 0
      %v1095 = vunpack.c.l.b16 %v229
      %v1096 = vunpack.c.l.b16 %v230
      %v1097 = vunpack.c.l.b16 %v231
      %v1098 = vunpack.c.l.b16 %v232
      %v1099 = vunpack.c.l.b16 %v233
      %v1100 = vunpack.c.l.b16 %v234
      %v1101 = vunpack.c.l.b16 %v235
      %v1102 = vunpack.c.l.b16 %v236
      %v1103 = vunpack.c.l.b16 %v237
      %v1104 = vunpack.c.l.b16 %v238
      %v1105 = vunpack.c.l.b16 %v239
      %v1106 = vunpack.c.l.b16 %v240
      %v1107 = vunpack.c.l.b16 %v241
      %v1108 = vunpack.c.l.b16 %v242
      %v1109 = vunpack.c.l.b16 %v243
      %v1110 = vunpack.c.l.b16 %v244
      %v1111 = vpack.c.b16 %v1096, %v1095
      %v1112 = vpack.c.b16 %v1098, %v1097
      %v1113 = vpack.c.b16 %v1100, %v1099
      %v1114 = vpack.c.b16 %v1102, %v1101
      %v1115 = vpack.c.b16 %v1104, %v1103
      %v1116 = vpack.c.b16 %v1106, %v1105
      %v1117 = vpack.c.b16 %v1108, %v1107
      %v1118 = vpack.c.b16 %v1110, %v1109
      %1127 = vmatpush.bf16.msra.mxu0 %v1118
      %1128 = vmatpush.bf16.msra.mxu0 %v1117
      %1129 = vmatpush.bf16.msra.mxu0 %v1116
      %1130 = vmatpush.bf16.msra.mxu0 %v1115
      %1131 = vmatpush.bf16.msra.mxu0 %v1114
      %1132 = vmatpush.bf16.msra.mxu0 %v1113
      %1133 = vmatpush.bf16.msra.mxu0 %v1112
      %1134 = vmatpush.bf16.msra.mxu0 %v1111
      %1135 = vmatmul.bf16.gmra.mxu0 %v1062
      %v1136 = vpop.f32.mrf.mxu0
      %v1137 = vadd.f32 %v1078, %v1136
      %v1138 = vpop.f32.mrf.mxu0
      %v1139 = vadd.f32 %v1078, %v1138
      %1140 = vmatmul.bf16.gmra.mxu0 %v1063
      %v1141 = vpop.f32.mrf.mxu0
      %v1142 = vadd.f32 %v1078, %v1141
      %v1143 = vpop.f32.mrf.mxu0
      %v1144 = vadd.f32 %v1078, %v1143
      %1145 = vmatmul.bf16.gmra.mxu0 %v1064
      %v1146 = vpop.f32.mrf.mxu0
      %v1147 = vadd.f32 %v1078, %v1146
      %v1148 = vpop.f32.mrf.mxu0
      %v1149 = vadd.f32 %v1078, %v1148
      %1150 = vmatmul.bf16.gmra.mxu0 %v1065
      %v1151 = vpop.f32.mrf.mxu0
      %v1152 = vadd.f32 %v1078, %v1151
      %v1153 = vpop.f32.mrf.mxu0
      %v1154 = vadd.f32 %v1078, %v1153
      %1155 = vmatmul.bf16.gmra.mxu0 %v1066
      %v1156 = vpop.f32.mrf.mxu0
      %v1157 = vadd.f32 %v1078, %v1156
      %v1158 = vpop.f32.mrf.mxu0
      %v1159 = vadd.f32 %v1078, %v1158
      %1160 = vmatmul.bf16.gmra.mxu0 %v1067
      %v1161 = vpop.f32.mrf.mxu0
      %v1162 = vadd.f32 %v1078, %v1161
      %v1163 = vpop.f32.mrf.mxu0
      %v1164 = vadd.f32 %v1078, %v1163
      %1165 = vmatmul.bf16.gmra.mxu0 %v1068
      %v1166 = vpop.f32.mrf.mxu0
      %v1167 = vadd.f32 %v1078, %v1166
      %v1168 = vpop.f32.mrf.mxu0
      %v1169 = vadd.f32 %v1078, %v1168
      %1170 = vmatmul.bf16.gmra.mxu0 %v1069
      %v1171 = vpop.f32.mrf.mxu0
      %v1172 = vadd.f32 %v1078, %v1171
      %v1173 = vpop.f32.mrf.mxu0
      %v1174 = vadd.f32 %v1078, %v1173
      %1175 = vmatmul.bf16.gmra.mxu0 %v1070
      %v1176 = vpop.f32.mrf.mxu0
      %v1177 = vadd.f32 %v1078, %v1176
      %v1178 = vpop.f32.mrf.mxu0
      %v1179 = vadd.f32 %v1078, %v1178
      %1180 = vmatmul.bf16.gmra.mxu0 %v1071
      %v1181 = vpop.f32.mrf.mxu0
      %v1182 = vadd.f32 %v1078, %v1181
      %v1183 = vpop.f32.mrf.mxu0
      %v1184 = vadd.f32 %v1078, %v1183
      %1185 = vmatmul.bf16.gmra.mxu0 %v1072
      %v1186 = vpop.f32.mrf.mxu0
      %v1187 = vadd.f32 %v1078, %v1186
      %v1188 = vpop.f32.mrf.mxu0
      %v1189 = vadd.f32 %v1078, %v1188
      %1190 = vmatmul.bf16.gmra.mxu0 %v1073
      %v1191 = vpop.f32.mrf.mxu0
      %v1192 = vadd.f32 %v1078, %v1191
      %v1193 = vpop.f32.mrf.mxu0
      %v1194 = vadd.f32 %v1078, %v1193
      %1195 = vmatmul.bf16.gmra.mxu0 %v1074
      %v1196 = vpop.f32.mrf.mxu0
      %v1197 = vadd.f32 %v1078, %v1196
      %v1198 = vpop.f32.mrf.mxu0
      %v1199 = vadd.f32 %v1078, %v1198
      %1200 = vmatmul.bf16.gmra.mxu0 %v1075
      %v1201 = vpop.f32.mrf.mxu0
      %v1202 = vadd.f32 %v1078, %v1201
      %v1203 = vpop.f32.mrf.mxu0
      %v1204 = vadd.f32 %v1078, %v1203
      %1205 = vmatmul.bf16.gmra.mxu0 %v1076
      %v1206 = vpop.f32.mrf.mxu0
      %v1207 = vadd.f32 %v1078, %v1206
      %v1208 = vpop.f32.mrf.mxu0
      %v1209 = vadd.f32 %v1078, %v1208
      %1210 = vmatmul.bf16.gmra.mxu0 %v1077
      %v1211 = vpop.f32.mrf.mxu0
      %v1212 = vadd.f32 %v1078, %v1211
      %v1213 = vpop.f32.mrf.mxu0
      %v1214 = vadd.f32 %v1078, %v1213
      %1215 = vdwg.mxu0
      %v1216 = vmax.f32 %v1137, 0.0
      %v1217 = vmax.f32 %v1139, 0.0
      %v1218 = vmax.f32 %v1142, 0.0
      %v1219 = vmax.f32 %v1144, 0.0
      %v1220 = vmax.f32 %v1147, 0.0
      %v1221 = vmax.f32 %v1149, 0.0
      %v1222 = vmax.f32 %v1152, 0.0
      %v1223 = vmax.f32 %v1154, 0.0
      %v1224 = vmax.f32 %v1157, 0.0
      %v1225 = vmax.f32 %v1159, 0.0
      %v1226 = vmax.f32 %v1162, 0.0
      %v1227 = vmax.f32 %v1164, 0.0
      %v1228 = vmax.f32 %v1167, 0.0
      %v1229 = vmax.f32 %v1169, 0.0
      %v1230 = vmax.f32 %v1172, 0.0
      %v1231 = vmax.f32 %v1174, 0.0
      %v1232 = vmax.f32 %v1177, 0.0
      %v1233 = vmax.f32 %v1179, 0.0
      %v1234 = vmax.f32 %v1182, 0.0
      %v1235 = vmax.f32 %v1184, 0.0
      %v1236 = vmax.f32 %v1187, 0.0
      %v1237 = vmax.f32 %v1189, 0.0
      %v1238 = vmax.f32 %v1192, 0.0
      %v1239 = vmax.f32 %v1194, 0.0
      %v1240 = vmax.f32 %v1197, 0.0
      %v1241 = vmax.f32 %v1199, 0.0
      %v1242 = vmax.f32 %v1202, 0.0
      %v1243 = vmax.f32 %v1204, 0.0
      %v1244 = vmax.f32 %v1207, 0.0
      %v1245 = vmax.f32 %v1209, 0.0
      %v1246 = vmax.f32 %v1212, 0.0
      %v1247 = vmax.f32 %v1214, 0.0
      %v1248 = vpack.c.bf16 %v1217, %v1216
      %v1249 = vpack.c.bf16 %v1219, %v1218
      %v1250 = vpack.c.bf16 %v1221, %v1220
      %v1251 = vpack.c.bf16 %v1223, %v1222
      %v1252 = vpack.c.bf16 %v1225, %v1224
      %v1253 = vpack.c.bf16 %v1227, %v1226
      %v1254 = vpack.c.bf16 %v1229, %v1228
      %v1255 = vpack.c.bf16 %v1231, %v1230
      %v1256 = vpack.c.bf16 %v1233, %v1232
      %v1257 = vpack.c.bf16 %v1235, %v1234
      %v1258 = vpack.c.bf16 %v1237, %v1236
      %v1259 = vpack.c.bf16 %v1239, %v1238
      %v1260 = vpack.c.bf16 %v1241, %v1240
      %v1261 = vpack.c.bf16 %v1243, %v1242
      %v1262 = vpack.c.bf16 %v1245, %v1244
      %v1263 = vpack.c.bf16 %v1247, %v1246
      %v1264 = vperm.slane %v266, 0
      %v1281 = vunpack.c.l.b16 %v245
      %v1282 = vunpack.c.l.b16 %v246
      %v1283 = vunpack.c.l.b16 %v247
      %v1284 = vunpack.c.l.b16 %v248
      %v1285 = vunpack.c.l.b16 %v249
      %v1286 = vunpack.c.l.b16 %v250
      %v1287 = vunpack.c.l.b16 %v251
      %v1288 = vunpack.c.l.b16 %v252
      %v1289 = vunpack.c.l.b16 %v253
      %v1290 = vunpack.c.l.b16 %v254
      %v1291 = vunpack.c.l.b16 %v255
      %v1292 = vunpack.c.l.b16 %v256
      %v1293 = vunpack.c.l.b16 %v257
      %v1294 = vunpack.c.l.b16 %v258
      %v1295 = vunpack.c.l.b16 %v259
      %v1296 = vunpack.c.l.b16 %v260
      %v1297 = vpack.c.b16 %v1282, %v1281
      %v1298 = vpack.c.b16 %v1284, %v1283
      %v1299 = vpack.c.b16 %v1286, %v1285
      %v1300 = vpack.c.b16 %v1288, %v1287
      %v1301 = vpack.c.b16 %v1290, %v1289
      %v1302 = vpack.c.b16 %v1292, %v1291
      %v1303 = vpack.c.b16 %v1294, %v1293
      %v1304 = vpack.c.b16 %v1296, %v1295
      %1313 = vmatpush.bf16.msra.mxu0 %v1304
      %1314 = vmatpush.bf16.msra.mxu0 %v1303
      %1315 = vmatpush.bf16.msra.mxu0 %v1302
      %1316 = vmatpush.bf16.msra.mxu0 %v1301
      %1317 = vmatpush.bf16.msra.mxu0 %v1300
      %1318 = vmatpush.bf16.msra.mxu0 %v1299
      %1319 = vmatpush.bf16.msra.mxu0 %v1298
      %1320 = vmatpush.bf16.msra.mxu0 %v1297
      %1321 = vmatmul.bf16.gmra.mxu0 %v1248
      %v1322 = vpop.f32.mrf.mxu0
      %v1323 = vadd.f32 %v1264, %v1322
      %v1324 = vpop.f32.mrf.mxu0
      %v1325 = vadd.f32 %v1264, %v1324
      %1326 = vmatmul.bf16.gmra.mxu0 %v1249
      %v1327 = vpop.f32.mrf.mxu0
      %v1328 = vadd.f32 %v1264, %v1327
      %v1329 = vpop.f32.mrf.mxu0
      %v1330 = vadd.f32 %v1264, %v1329
      %1331 = vmatmul.bf16.gmra.mxu0 %v1250
      %v1332 = vpop.f32.mrf.mxu0
      %v1333 = vadd.f32 %v1264, %v1332
      %v1334 = vpop.f32.mrf.mxu0
      %v1335 = vadd.f32 %v1264, %v1334
      %1336 = vmatmul.bf16.gmra.mxu0 %v1251
      %v1337 = vpop.f32.mrf.mxu0
      %v1338 = vadd.f32 %v1264, %v1337
      %v1339 = vpop.f32.mrf.mxu0
      %v1340 = vadd.f32 %v1264, %v1339
      %1341 = vmatmul.bf16.gmra.mxu0 %v1252
      %v1342 = vpop.f32.mrf.mxu0
      %v1343 = vadd.f32 %v1264, %v1342
      %v1344 = vpop.f32.mrf.mxu0
      %v1345 = vadd.f32 %v1264, %v1344
      %1346 = vmatmul.bf16.gmra.mxu0 %v1253
      %v1347 = vpop.f32.mrf.mxu0
      %v1348 = vadd.f32 %v1264, %v1347
      %v1349 = vpop.f32.mrf.mxu0
      %v1350 = vadd.f32 %v1264, %v1349
      %1351 = vmatmul.bf16.gmra.mxu0 %v1254
      %v1352 = vpop.f32.mrf.mxu0
      %v1353 = vadd.f32 %v1264, %v1352
      %v1354 = vpop.f32.mrf.mxu0
      %v1355 = vadd.f32 %v1264, %v1354
      %1356 = vmatmul.bf16.gmra.mxu0 %v1255
      %v1357 = vpop.f32.mrf.mxu0
      %v1358 = vadd.f32 %v1264, %v1357
      %v1359 = vpop.f32.mrf.mxu0
      %v1360 = vadd.f32 %v1264, %v1359
      %1361 = vmatmul.bf16.gmra.mxu0 %v1256
      %v1362 = vpop.f32.mrf.mxu0
      %v1363 = vadd.f32 %v1264, %v1362
      %v1364 = vpop.f32.mrf.mxu0
      %v1365 = vadd.f32 %v1264, %v1364
      %1366 = vmatmul.bf16.gmra.mxu0 %v1257
      %v1367 = vpop.f32.mrf.mxu0
      %v1368 = vadd.f32 %v1264, %v1367
      %v1369 = vpop.f32.mrf.mxu0
      %v1370 = vadd.f32 %v1264, %v1369
      %1371 = vmatmul.bf16.gmra.mxu0 %v1258
      %v1372 = vpop.f32.mrf.mxu0
      %v1373 = vadd.f32 %v1264, %v1372
      %v1374 = vpop.f32.mrf.mxu0
      %v1375 = vadd.f32 %v1264, %v1374
      %1376 = vmatmul.bf16.gmra.mxu0 %v1259
      %v1377 = vpop.f32.mrf.mxu0
      %v1378 = vadd.f32 %v1264, %v1377
      %v1379 = vpop.f32.mrf.mxu0
      %v1380 = vadd.f32 %v1264, %v1379
      %1381 = vmatmul.bf16.gmra.mxu0 %v1260
      %v1382 = vpop.f32.mrf.mxu0
      %v1383 = vadd.f32 %v1264, %v1382
      %v1384 = vpop.f32.mrf.mxu0
      %v1385 = vadd.f32 %v1264, %v1384
      %1386 = vmatmul.bf16.gmra.mxu0 %v1261
      %v1387 = vpop.f32.mrf.mxu0
      %v1388 = vadd.f32 %v1264, %v1387
      %v1389 = vpop.f32.mrf.mxu0
      %v1390 = vadd.f32 %v1264, %v1389
      %1391 = vmatmul.bf16.gmra.mxu0 %v1262
      %v1392 = vpop.f32.mrf.mxu0
      %v1393 = vadd.f32 %v1264, %v1392
      %v1394 = vpop.f32.mrf.mxu0
      %v1395 = vadd.f32 %v1264, %v1394
      %1396 = vmatmul.bf16.gmra.mxu0 %v1263
      %v1397 = vpop.f32.mrf.mxu0
      %v1398 = vadd.f32 %v1264, %v1397
      %v1399 = vpop.f32.mrf.mxu0
      %v1400 = vadd.f32 %v1264, %v1399
      %1401 = vdwg.mxu0
      %1402 = vst [vmem:[%s172] sm:$0xff] %v1323
      %1403 = vst [vmem:[%s172 + $0x8] sm:$0xff] %v1325
      %1404 = vst [vmem:[%s172 + $0x10] sm:$0xff] %v1328
      %1405 = vst [vmem:[%s172 + $0x18] sm:$0xff] %v1330
      %1406 = vst [vmem:[%s172 + $0x20] sm:$0xff] %v1333
      %1407 = vst [vmem:[%s172 + $0x28] sm:$0xff] %v1335
      %1408 = vst [vmem:[%s172 + $0x30] sm:$0xff] %v1338
      %1409 = vst [vmem:[%s172 + $0x38] sm:$0xff] %v1340
      %1410 = vst [vmem:[%s172 + $0x40] sm:$0xff] %v1343
      %1411 = vst [vmem:[%s172 + $0x48] sm:$0xff] %v1345
      %1412 = vst [vmem:[%s172 + $0x50] sm:$0xff] %v1348
      %1413 = vst [vmem:[%s172 + $0x58] sm:$0xff] %v1350
      %1414 = vst [vmem:[%s172 + $0x60] sm:$0xff] %v1353
      %1415 = vst [vmem:[%s172 + $0x68] sm:$0xff] %v1355
      %1416 = vst [vmem:[%s172 + $0x70] sm:$0xff] %v1358
      %1417 = vst [vmem:[%s172 + $0x78] sm:$0xff] %v1360
      %1418 = vst [vmem:[%s172 + $0x80] sm:$0xff] %v1363
      %1419 = vst [vmem:[%s172 + $0x88] sm:$0xff] %v1365
      %1420 = vst [vmem:[%s172 + $0x90] sm:$0xff] %v1368
      %1421 = vst [vmem:[%s172 + $0x98] sm:$0xff] %v1370
      %1422 = vst [vmem:[%s172 + $0xa0] sm:$0xff] %v1373
      %1423 = vst [vmem:[%s172 + $0xa8] sm:$0xff] %v1375
      %1424 = vst [vmem:[%s172 + $0xb0] sm:$0xff] %v1378
      %1425 = vst [vmem:[%s172 + $0xb8] sm:$0xff] %v1380
      %1426 = vst [vmem:[%s172 + $0xc0] sm:$0xff] %v1383
      %1427 = vst [vmem:[%s172 + $0xc8] sm:$0xff] %v1385
      %1428 = vst [vmem:[%s172 + $0xd0] sm:$0xff] %v1388
      %1429 = vst [vmem:[%s172 + $0xd8] sm:$0xff] %v1390
      %1430 = vst [vmem:[%s172 + $0xe0] sm:$0xff] %v1393
      %1431 = vst [vmem:[%s172 + $0xe8] sm:$0xff] %v1395
      %1432 = vst [vmem:[%s172 + $0xf0] sm:$0xff] %v1398
      %1433 = vst [vmem:[%s172 + $0xf8] sm:$0xff] %v1400
      %s1434 = smul.u32 32, %s14
      %p1435 = scmp.lt.s32.totalorder %s1434, 63
      %s1436 = scalar_select %p1435, %s1434, 63
      %s1437 = smul.addr %s1436, 8
      %s1438 = scalar_lea.vmem %s3, %s1437
      // Predicated region
      $region33: #{critic_forward.1} parent=31 // pred_check
        %p1439 = pneg %p100
      $region34: #{critic_forward.1} parent=31 // pred_check_branch
        %1441 = sbr.rel (%p1439) target = $region36
      $region35: #{critic_forward.1} parent=31 // pred_region
        %s1442 = smul.u32 32, %s14
      $region36: #{critic_forward.1} parent=31 // pred_fallthru
        _
    $region32: #{critic_forward.1} parent=5 // pred_fallthru
      _
    %p1443 = scmp.le.s32.totalorder 2, %s9
    // Predicated region
    $region37: #{critic_forward.1} parent=5 // pred_check
      %p1444 = pneg %p1443
    $region38: #{critic_forward.1} parent=5 // pred_check_branch
      %1446 = sbr.rel (%p1444) target = $region40
    $region39: #{critic_forward.1} parent=5 // pred_region
      %s1447 = ssub.s32 %s9, 2
      // Predicated region
      $region41: #{critic_forward.1} parent=39 // pred_check
        %p1448 = pneg %p106
      $region42: #{critic_forward.1} parent=39 // pred_check_branch
        %1450 = sbr.rel (%p1448) target = $region44
      $region43: #{critic_forward.1} parent=39 // pred_region
        %s1451 = smul.u32 32, %s15
        %p1452 = scmp.lt.s32.totalorder %s1451, 63
        %s1453 = scalar_select %p1452, %s1451, 63
        %s1454 = smul.addr %s1453, 8
        %s1455 = scalar_lea.vmem %s3, %s1454
      $region44: #{critic_forward.1} parent=39 // pred_fallthru
        _
    $region40: #{critic_forward.1} parent=5 // pred_fallthru
      _
  $region6: #{critic_forward.1} parent=0 // loop_footer
    %s13 = sadd.s32 1, %s9
  $region7: #{critic_forward.1} parent=0 // loop_footer_branch
    %8 = sbr.rel target = $region3
  $region8: #{critic_forward.1} parent=0 // loop_exit
    _

</llo_original>
